<compile_context>
chip_gen: v7x
topology: tpu7x:2x2x1
jax: 0.10.0
libtpu: 0.0.40
codegen_flags: <defaults>
</compile_context>

<pallas_src>
import functools
import math

import jax
import jax.numpy as jnp
from jax.experimental import pallas as pl
from jax.experimental.pallas import tpu as pltpu

# ----------------------------------------------------------------------------
# Problem sizes (small, consistent with the module; DGCNN-style settings).
# ----------------------------------------------------------------------------
B = 2            # batch
C = 64           # in_channels
N = 128          # number of input points
K_NN = 16        # k nearest neighbours
RATIO = 0.5      # pooling ratio  -> keeps M = 64 points
M = math.floor(N * RATIO)

# TODO(synk): num_points >= 0 and scoring_fun in {'softmax', 'leaky-relu'} code
# paths are not wired up; only the module defaults (num_points=-1, 'tanh') are.


# ----------------------------------------------------------------------------
# Fused per-batch kernel: kNN + edge scoring + max over neighbours + ReLU +
# top-M gather.  The batch dimension is squeezed away by the BlockSpecs.
# ----------------------------------------------------------------------------
def edge_pool_kernel(x_nc_ref, x_cn_ref, wdiff_ref, wcent_ref, bias_ref,
                     out_ref, *, k_nn, num_keep):
    """x_nc_ref : (N, C) points on sublanes, channels on lanes
    x_cn_ref : (C, N) channels on sublanes, points on lanes (original layout)
    wdiff_ref: (C, 1) = W[:C]           (acts on x_j)
    wcent_ref: (1, C) = W[C:] - W[:C]   (acts on x_i, fold of the 1x1 conv)
    bias_ref : (1, 1) score-conv bias (SMEM)
    out_ref  : (M, C) pooled features, ordered by descending score."""
    x_nc = x_nc_ref[...]                                   # (N, C)
    x_cn = x_cn_ref[...]                                    # (C, N)
    n = x_nc.shape[0]
    neg_inf = jnp.float32(-jnp.inf)

    # ---- pairwise distance proxy.  The per-row constant -|x_i|^2 is dropped:
    # it cannot change per-row kNN ranking (self stays the row max). ---------
    gram = jnp.dot(x_nc, x_cn, preferred_element_type=jnp.float32)   # (N, N)
    sq_row = jnp.sum(x_cn * x_cn, axis=0, keepdims=True)             # (1, N)
    dist = 2.0 * gram - sq_row                                        # (N, N)

    # ---- neighbour-side linear score piece, directly in row layout (no eye
    # trick needed: the (C, N) layout is an input). --------------------------
    s_row = jnp.sum(wdiff_ref[...] * x_cn, axis=0, keepdims=True)    # (1, N)

    # ---- kNN threshold: k rounds of "peel off the current row max".  Each
    # round is ONE lane-reduce + ONE compare/select; no score work inside. ---
    def knn_step(_, carry):
        d, _ = carry
        d_max = jnp.max(d, axis=1, keepdims=True)                    # (N, 1)
        return jnp.where(d >= d_max, neg_inf, d), d_max

    kth0 = jnp.zeros((n, 1), jnp.float32)
    _, kth = jax.lax.fori_loop(0, k_nn, knn_step, (dist, kth0), unroll=True)

    # Single masked reduce over the ORIGINAL distances: the kept set
    # {j : dist[i,j] >= kth[i]} equals the union of the k peeled rounds
    # (ties handled exactly as the previous d >= d_max behaviour).
    best = jnp.max(jnp.where(dist >= kth, s_row, neg_inf),
                   axis=1, keepdims=True)                             # (N, 1)

    # ---- centre-side piece + ReLU'ed per-point score -----------------------
    c_col = (jnp.sum(x_nc * wcent_ref[...], axis=1, keepdims=True)
             + bias_ref[0, 0])                                        # (N, 1)
    scores_col = jnp.maximum(best + c_col, 0.0)                       # (N, 1)

    # Row-layout copy of the scores.  This MUST be a bit-exact relayout of
    # scores_col (stable-rank tie-breaks), so use the one-hot (eye) fold;
    # it runs once, outside the hot loop.
    row_ids = jax.lax.broadcasted_iota(jnp.int32, (n, n), 0)
    col_ids = jax.lax.broadcasted_iota(jnp.int32, (n, n), 1)
    eye = (row_ids == col_ids).astype(jnp.float32)                    # (N, N)
    scores_row = jnp.sum(scores_col * eye, axis=0, keepdims=True)     # (1, N)

    # ---- stable descending rank (ties -> lower index first) ---------------
    higher = (scores_col > scores_row) | (
        (scores_col == scores_row) & (row_ids < col_ids))             # (N, N)
    rank_row = jnp.sum(higher.astype(jnp.float32), axis=0, keepdims=True)

    # ---- top-M gather as a one-hot permutation matmul (gather-free) -------
    m_iota = jax.lax.broadcasted_iota(
        jnp.int32, (num_keep, n), 0).astype(jnp.float32)
    perm = (rank_row == m_iota).astype(jnp.float32)                   # (M, N)
    gathered = jnp.dot(perm, x_nc, preferred_element_type=jnp.float32)  # (M, C)
    # tanh after the (exact, one-hot) gather: M rows instead of N.
    g_score = jnp.sum(perm * scores_row, axis=1, keepdims=True)         # (M, 1)
    out_ref[...] = gathered * jnp.tanh(g_score)


# ----------------------------------------------------------------------------
# Wrapper: parameter folding + single pallas_call with a parallel batch grid.
# ----------------------------------------------------------------------------
def edge_pooling_forward(feat, weight, bias, *, k=K_NN, ratio=RATIO):
    """feat: (B, C, N) (PyTorch layout); weight: (1, 2C, 1, 1); bias: (1,)."""
    b, c, n = feat.shape
    num_keep = math.floor(n * ratio)

    w = weight.reshape(2 * c).astype(jnp.float32)
    w_diff = w[:c].reshape(c, 1)                    # column layout for (C, N)
    w_cent = (w[c:] - w[:c]).reshape(1, c)          # row layout for (N, C)
    b2d = bias.reshape(1, 1).astype(jnp.float32)
    x_cn = feat.astype(jnp.float32)                 # (B, C, N)
    x_nc = jnp.swapaxes(x_cn, 1, 2)                 # (B, N, C)

    kernel = functools.partial(edge_pool_kernel, k_nn=k, num_keep=num_keep)
    return pl.pallas_call(
        kernel,
        out_shape=jax.ShapeDtypeStruct((b, num_keep, c), jnp.float32),
        grid=(b,),
        in_specs=[
            pl.BlockSpec((None, n, c), lambda i: (i, 0, 0)),
            pl.BlockSpec((None, c, n), lambda i: (i, 0, 0)),
            pl.BlockSpec((c, 1), lambda i: (0, 0)),
            pl.BlockSpec((1, c), lambda i: (0, 0)),
            pl.BlockSpec(memory_space=pltpu.MemorySpace.SMEM),
        ],
        out_specs=pl.BlockSpec((None, num_keep, c), lambda i: (i, 0, 0)),
        compiler_params=pltpu.CompilerParams(
            dimension_semantics=("parallel",)),
    )(x_nc, x_cn, w_diff, w_cent, b2d)


# ----------------------------------------------------------------------------
# Pure-JAX reference: direct port of the PyTorch module (gather-based)
# ----------------------------------------------------------------------------
def reference_forward(feat, weight, bias, *, k, ratio):
    b, c, n = feat.shape
    m = math.floor(n * ratio)
    hp = jax.lax.Precision.HIGHEST
    x = feat.astype(jnp.float32)

    inner = -2.0 * jnp.einsum("bcn,bcm->bnm", x, x, precision=hp)
    xx = jnp.sum(x * x, axis=1, keepdims=True)                    # (B, 1, N)
    pairwise = -xx - inner - jnp.swapaxes(xx, 1, 2)                # (B, N, N)
    _, knn_idx = jax.lax.top_k(pairwise, k)                        # (B, N, k)

    x_nc = jnp.swapaxes(x, 1, 2)                                   # (B, N, C)
    nbr = jax.vmap(lambda xn, ids: xn[ids])(x_nc, knn_idx)         # (B, N, k, C)
    ctr = jnp.broadcast_to(x_nc[:, :, None, :], nbr.shape)
    edge = jnp.concatenate([nbr - ctr, ctr], axis=-1)              # (B, N, k, 2C)

    w = weight.reshape(2 * c).astype(jnp.float32)
    e_scores = jnp.einsum("bnkc,c->bnk", edge, w, precision=hp) + bias.reshape(())
    scores = jnp.maximum(jnp.max(e_scores, axis=-1), 0.0)          # (B, N)

    top, top_idx = jax.lax.top_k(scores, m)                        # (B, M)
    sel = jax.vmap(lambda xn, ids: xn[ids])(x_nc, top_idx)         # (B, M, C)
    return sel * jnp.tanh(top)[:, :, None]


if __name__ == "__main__":
    key = jax.random.PRNGKey(0)
    k_feat, k_w, k_b = jax.random.split(key, 3)
    feat = jax.random.normal(k_feat, (B, C, N), jnp.float32)             # (B, C, N)
    weight = 0.1 * jax.random.normal(k_w, (1, 2 * C, 1, 1), jnp.float32)  # Conv2d(2C,1,1)
    bias = 0.1 * jax.random.normal(k_b, (1,), jnp.float32)

    fwd = jax.jit(functools.partial(edge_pooling_forward, k=K_NN, ratio=RATIO))
    out = jax.block_until_ready(fwd(feat, weight, bias))
    assert out.shape == (B, M, C), out.shape

    ref = reference_forward(feat, weight, bias, k=K_NN, ratio=RATIO)
    max_err = float(jnp.max(jnp.abs(out - ref)))
    assert jnp.allclose(out, ref, atol=1e-4, rtol=1e-4), (
        f"mismatch vs reference (max abs err {max_err})")
    print("KERNEL_OK")
</pallas_src>

<mosaic_0001>
module attributes {stable_mosaic.version = 11 : i64} {
  func.func @edge_pool_kernel(%arg0: i32, %arg1: memref<1x128x64xf32, #tpu.memory_space<vmem>>, %arg2: memref<1x64x128xf32, #tpu.memory_space<vmem>>, %arg3: memref<64x1xf32, #tpu.memory_space<vmem>>, %arg4: memref<1x64xf32, #tpu.memory_space<vmem>>, %arg5: memref<1x1xf32, #tpu.memory_space<smem>>, %arg6: memref<1x64x64xf32, #tpu.memory_space<vmem>>) attributes {dimension_semantics = [#tpu.dimension_semantics<parallel>], iteration_bounds = array<i64: 2>, scalar_prefetch = 0 : i64, scratch_operands = 0 : i64, tpu.core_type = #tpu.core_type<tc>, window_params = [{transform_indices = @transform_0, window_bounds = array<i64: 1, 128, 64>}, {transform_indices = @transform_1, window_bounds = array<i64: 1, 64, 128>}, {pipeline_mode = #tpu.pipeline_mode<synchronous>, transform_indices = @transform_2, window_bounds = array<i64: 64, 1>}, {pipeline_mode = #tpu.pipeline_mode<synchronous>, transform_indices = @transform_3, window_bounds = array<i64: 1, 64>}, {transform_indices = @transform_4, window_bounds = array<i64: 1, 1>}, {transform_indices = @transform_5, window_bounds = array<i64: 1, 64, 64>}]} {
    %c0 = arith.constant 0 : index
    %c0_0 = arith.constant 0 : index
    %c0_1 = arith.constant 0 : index
    %0 = vector.load %arg1[%c0, %c0_0, %c0_1] : memref<1x128x64xf32, #tpu.memory_space<vmem>>, vector<1x128x64xf32>
    %1 = vector.shape_cast %0 : vector<1x128x64xf32> to vector<128x64xf32>
    %c0_2 = arith.constant 0 : index
    %c0_3 = arith.constant 0 : index
    %c0_4 = arith.constant 0 : index
    %2 = vector.load %arg2[%c0_2, %c0_3, %c0_4] : memref<1x64x128xf32, #tpu.memory_space<vmem>>, vector<1x64x128xf32>
    %3 = vector.shape_cast %2 : vector<1x64x128xf32> to vector<64x128xf32>
    %cst = arith.constant dense<0.000000e+00> : vector<128x128xf32>
    %4 = tpu.matmul %1, %3, %cst {dimension_numbers = #tpu.dot_dimension_numbers<[1], [0], [0], [1], [0, 0, 1, 1], [], []>} : vector<128x64xf32>, vector<64x128xf32>, vector<128x128xf32> -> vector<128x128xf32>
    %5 = arith.mulf %3, %3 : vector<64x128xf32>
    %cst_5 = arith.constant dense<0.000000e+00> : vector<128xf32>
    %6 = vector.multi_reduction <add>, %5, %cst_5 [0] : vector<64x128xf32> to vector<128xf32>
    %7 = vector.shape_cast %6 : vector<128xf32> to vector<1x128xf32>
    %cst_6 = arith.constant 2.000000e+00 : f32
    %8 = vector.broadcast %cst_6 : f32 to vector<128x128xf32>
    %9 = arith.mulf %8, %4 : vector<128x128xf32>
    %10 = vector.broadcast %7 : vector<1x128xf32> to vector<128x128xf32>
    %11 = arith.subf %9, %10 : vector<128x128xf32>
    %c0_7 = arith.constant 0 : index
    %c0_8 = arith.constant 0 : index
    %12 = vector.load %arg3[%c0_7, %c0_8] : memref<64x1xf32, #tpu.memory_space<vmem>>, vector<64x1xf32>
    %13 = vector.broadcast %12 : vector<64x1xf32> to vector<64x128xf32>
    %14 = arith.mulf %13, %3 : vector<64x128xf32>
    %cst_9 = arith.constant dense<0.000000e+00> : vector<128xf32>
    %15 = vector.multi_reduction <add>, %14, %cst_9 [0] : vector<64x128xf32> to vector<128xf32>
    %16 = vector.shape_cast %15 : vector<128xf32> to vector<1x128xf32>
    %cst_10 = arith.constant 0.000000e+00 : f32
    %17 = vector.broadcast %cst_10 : f32 to vector<128x1xf32>
    %cst_11 = arith.constant 0xFF800000 : f32
    %c0_i32 = arith.constant 0 : i32
    %cst_12 = arith.constant dense<0xFF800000> : vector<128xf32>
    %18 = vector.multi_reduction <maximumf>, %11, %cst_12 [1] : vector<128x128xf32> to vector<128xf32>
    %19 = vector.shape_cast %18 : vector<128xf32> to vector<128x1xf32>
    %20 = vector.broadcast %19 : vector<128x1xf32> to vector<128x128xf32>
    %21 = arith.cmpf oge, %11, %20 : vector<128x128xf32>
    %22 = vector.broadcast %cst_11 : f32 to vector<128x128xf32>
    %23 = arith.select %21, %22, %11 : vector<128x128xi1>, vector<128x128xf32>
    %c1_i32 = arith.constant 1 : i32
    %cst_13 = arith.constant dense<0xFF800000> : vector<128xf32>
    %24 = vector.multi_reduction <maximumf>, %23, %cst_13 [1] : vector<128x128xf32> to vector<128xf32>
    %25 = vector.shape_cast %24 : vector<128xf32> to vector<128x1xf32>
    %26 = vector.broadcast %25 : vector<128x1xf32> to vector<128x128xf32>
    %27 = arith.cmpf oge, %23, %26 : vector<128x128xf32>
    %28 = vector.broadcast %cst_11 : f32 to vector<128x128xf32>
    %29 = arith.select %27, %28, %23 : vector<128x128xi1>, vector<128x128xf32>
    %c2_i32 = arith.constant 2 : i32
    %cst_14 = arith.constant dense<0xFF800000> : vector<128xf32>
    %30 = vector.multi_reduction <maximumf>, %29, %cst_14 [1] : vector<128x128xf32> to vector<128xf32>
    %31 = vector.shape_cast %30 : vector<128xf32> to vector<128x1xf32>
    %32 = vector.broadcast %31 : vector<128x1xf32> to vector<128x128xf32>
    %33 = arith.cmpf oge, %29, %32 : vector<128x128xf32>
    %34 = vector.broadcast %cst_11 : f32 to vector<128x128xf32>
    %35 = arith.select %33, %34, %29 : vector<128x128xi1>, vector<128x128xf32>
    %c3_i32 = arith.constant 3 : i32
    %cst_15 = arith.constant dense<0xFF800000> : vector<128xf32>
    %36 = vector.multi_reduction <maximumf>, %35, %cst_15 [1] : vector<128x128xf32> to vector<128xf32>
    %37 = vector.shape_cast %36 : vector<128xf32> to vector<128x1xf32>
    %38 = vector.broadcast %37 : vector<128x1xf32> to vector<128x128xf32>
    %39 = arith.cmpf oge, %35, %38 : vector<128x128xf32>
    %40 = vector.broadcast %cst_11 : f32 to vector<128x128xf32>
    %41 = arith.select %39, %40, %35 : vector<128x128xi1>, vector<128x128xf32>
    %c4_i32 = arith.constant 4 : i32
    %cst_16 = arith.constant dense<0xFF800000> : vector<128xf32>
    %42 = vector.multi_reduction <maximumf>, %41, %cst_16 [1] : vector<128x128xf32> to vector<128xf32>
    %43 = vector.shape_cast %42 : vector<128xf32> to vector<128x1xf32>
    %44 = vector.broadcast %43 : vector<128x1xf32> to vector<128x128xf32>
    %45 = arith.cmpf oge, %41, %44 : vector<128x128xf32>
    %46 = vector.broadcast %cst_11 : f32 to vector<128x128xf32>
    %47 = arith.select %45, %46, %41 : vector<128x128xi1>, vector<128x128xf32>
    %c5_i32 = arith.constant 5 : i32
    %cst_17 = arith.constant dense<0xFF800000> : vector<128xf32>
    %48 = vector.multi_reduction <maximumf>, %47, %cst_17 [1] : vector<128x128xf32> to vector<128xf32>
    %49 = vector.shape_cast %48 : vector<128xf32> to vector<128x1xf32>
    %50 = vector.broadcast %49 : vector<128x1xf32> to vector<128x128xf32>
    %51 = arith.cmpf oge, %47, %50 : vector<128x128xf32>
    %52 = vector.broadcast %cst_11 : f32 to vector<128x128xf32>
    %53 = arith.select %51, %52, %47 : vector<128x128xi1>, vector<128x128xf32>
    %c6_i32 = arith.constant 6 : i32
    %cst_18 = arith.constant dense<0xFF800000> : vector<128xf32>
    %54 = vector.multi_reduction <maximumf>, %53, %cst_18 [1] : vector<128x128xf32> to vector<128xf32>
    %55 = vector.shape_cast %54 : vector<128xf32> to vector<128x1xf32>
    %56 = vector.broadcast %55 : vector<128x1xf32> to vector<128x128xf32>
    %57 = arith.cmpf oge, %53, %56 : vector<128x128xf32>
    %58 = vector.broadcast %cst_11 : f32 to vector<128x128xf32>
    %59 = arith.select %57, %58, %53 : vector<128x128xi1>, vector<128x128xf32>
    %c7_i32 = arith.constant 7 : i32
    %cst_19 = arith.constant dense<0xFF800000> : vector<128xf32>
    %60 = vector.multi_reduction <maximumf>, %59, %cst_19 [1] : vector<128x128xf32> to vector<128xf32>
    %61 = vector.shape_cast %60 : vector<128xf32> to vector<128x1xf32>
    %62 = vector.broadcast %61 : vector<128x1xf32> to vector<128x128xf32>
    %63 = arith.cmpf oge, %59, %62 : vector<128x128xf32>
    %64 = vector.broadcast %cst_11 : f32 to vector<128x128xf32>
    %65 = arith.select %63, %64, %59 : vector<128x128xi1>, vector<128x128xf32>
    %c8_i32 = arith.constant 8 : i32
    %cst_20 = arith.constant dense<0xFF800000> : vector<128xf32>
    %66 = vector.multi_reduction <maximumf>, %65, %cst_20 [1] : vector<128x128xf32> to vector<128xf32>
    %67 = vector.shape_cast %66 : vector<128xf32> to vector<128x1xf32>
    %68 = vector.broadcast %67 : vector<128x1xf32> to vector<128x128xf32>
    %69 = arith.cmpf oge, %65, %68 : vector<128x128xf32>
    %70 = vector.broadcast %cst_11 : f32 to vector<128x128xf32>
    %71 = arith.select %69, %70, %65 : vector<128x128xi1>, vector<128x128xf32>
    %c9_i32 = arith.constant 9 : i32
    %cst_21 = arith.constant dense<0xFF800000> : vector<128xf32>
    %72 = vector.multi_reduction <maximumf>, %71, %cst_21 [1] : vector<128x128xf32> to vector<128xf32>
    %73 = vector.shape_cast %72 : vector<128xf32> to vector<128x1xf32>
    %74 = vector.broadcast %73 : vector<128x1xf32> to vector<128x128xf32>
    %75 = arith.cmpf oge, %71, %74 : vector<128x128xf32>
    %76 = vector.broadcast %cst_11 : f32 to vector<128x128xf32>
    %77 = arith.select %75, %76, %71 : vector<128x128xi1>, vector<128x128xf32>
    %c10_i32 = arith.constant 10 : i32
    %cst_22 = arith.constant dense<0xFF800000> : vector<128xf32>
    %78 = vector.multi_reduction <maximumf>, %77, %cst_22 [1] : vector<128x128xf32> to vector<128xf32>
    %79 = vector.shape_cast %78 : vector<128xf32> to vector<128x1xf32>
    %80 = vector.broadcast %79 : vector<128x1xf32> to vector<128x128xf32>
    %81 = arith.cmpf oge, %77, %80 : vector<128x128xf32>
    %82 = vector.broadcast %cst_11 : f32 to vector<128x128xf32>
    %83 = arith.select %81, %82, %77 : vector<128x128xi1>, vector<128x128xf32>
    %c11_i32 = arith.constant 11 : i32
    %cst_23 = arith.constant dense<0xFF800000> : vector<128xf32>
    %84 = vector.multi_reduction <maximumf>, %83, %cst_23 [1] : vector<128x128xf32> to vector<128xf32>
    %85 = vector.shape_cast %84 : vector<128xf32> to vector<128x1xf32>
    %86 = vector.broadcast %85 : vector<128x1xf32> to vector<128x128xf32>
    %87 = arith.cmpf oge, %83, %86 : vector<128x128xf32>
    %88 = vector.broadcast %cst_11 : f32 to vector<128x128xf32>
    %89 = arith.select %87, %88, %83 : vector<128x128xi1>, vector<128x128xf32>
    %c12_i32 = arith.constant 12 : i32
    %cst_24 = arith.constant dense<0xFF800000> : vector<128xf32>
    %90 = vector.multi_reduction <maximumf>, %89, %cst_24 [1] : vector<128x128xf32> to vector<128xf32>
    %91 = vector.shape_cast %90 : vector<128xf32> to vector<128x1xf32>
    %92 = vector.broadcast %91 : vector<128x1xf32> to vector<128x128xf32>
    %93 = arith.cmpf oge, %89, %92 : vector<128x128xf32>
    %94 = vector.broadcast %cst_11 : f32 to vector<128x128xf32>
    %95 = arith.select %93, %94, %89 : vector<128x128xi1>, vector<128x128xf32>
    %c13_i32 = arith.constant 13 : i32
    %cst_25 = arith.constant dense<0xFF800000> : vector<128xf32>
    %96 = vector.multi_reduction <maximumf>, %95, %cst_25 [1] : vector<128x128xf32> to vector<128xf32>
    %97 = vector.shape_cast %96 : vector<128xf32> to vector<128x1xf32>
    %98 = vector.broadcast %97 : vector<128x1xf32> to vector<128x128xf32>
    %99 = arith.cmpf oge, %95, %98 : vector<128x128xf32>
    %100 = vector.broadcast %cst_11 : f32 to vector<128x128xf32>
    %101 = arith.select %99, %100, %95 : vector<128x128xi1>, vector<128x128xf32>
    %c14_i32 = arith.constant 14 : i32
    %cst_26 = arith.constant dense<0xFF800000> : vector<128xf32>
    %102 = vector.multi_reduction <maximumf>, %101, %cst_26 [1] : vector<128x128xf32> to vector<128xf32>
    %103 = vector.shape_cast %102 : vector<128xf32> to vector<128x1xf32>
    %104 = vector.broadcast %103 : vector<128x1xf32> to vector<128x128xf32>
    %105 = arith.cmpf oge, %101, %104 : vector<128x128xf32>
    %106 = vector.broadcast %cst_11 : f32 to vector<128x128xf32>
    %107 = arith.select %105, %106, %101 : vector<128x128xi1>, vector<128x128xf32>
    %c15_i32 = arith.constant 15 : i32
    %cst_27 = arith.constant dense<0xFF800000> : vector<128xf32>
    %108 = vector.multi_reduction <maximumf>, %107, %cst_27 [1] : vector<128x128xf32> to vector<128xf32>
    %109 = vector.shape_cast %108 : vector<128xf32> to vector<128x1xf32>
    %110 = vector.broadcast %109 : vector<128x1xf32> to vector<128x128xf32>
    %111 = arith.cmpf oge, %107, %110 : vector<128x128xf32>
    %112 = vector.broadcast %cst_11 : f32 to vector<128x128xf32>
    %113 = arith.select %111, %112, %107 : vector<128x128xi1>, vector<128x128xf32>
    %114 = vector.broadcast %109 : vector<128x1xf32> to vector<128x128xf32>
    %115 = arith.cmpf oge, %11, %114 : vector<128x128xf32>
    %cst_28 = arith.constant 0xFF800000 : f32
    %116 = vector.shape_cast %16 : vector<1x128xf32> to vector<1x128xf32>
    %117 = vector.broadcast %116 : vector<1x128xf32> to vector<128x128xf32>
    %118 = vector.broadcast %cst_28 : f32 to vector<128x128xf32>
    %119 = arith.select %115, %117, %118 : vector<128x128xi1>, vector<128x128xf32>
    %cst_29 = arith.constant dense<0xFF800000> : vector<128xf32>
    %120 = vector.multi_reduction <maximumf>, %119, %cst_29 [1] : vector<128x128xf32> to vector<128xf32>
    %121 = vector.shape_cast %120 : vector<128xf32> to vector<128x1xf32>
    %c0_30 = arith.constant 0 : index
    %c0_31 = arith.constant 0 : index
    %122 = vector.load %arg4[%c0_30, %c0_31] : memref<1x64xf32, #tpu.memory_space<vmem>>, vector<1x64xf32>
    %123 = vector.broadcast %122 : vector<1x64xf32> to vector<128x64xf32>
    %124 = arith.mulf %1, %123 : vector<128x64xf32>
    %cst_32 = arith.constant dense<0.000000e+00> : vector<128xf32>
    %125 = vector.multi_reduction <add>, %124, %cst_32 [1] : vector<128x64xf32> to vector<128xf32>
    %126 = vector.shape_cast %125 : vector<128xf32> to vector<128x1xf32>
    %c0_33 = arith.constant 0 : index
    %c0_34 = arith.constant 0 : index
    %127 = memref.load %arg5[%c0_33, %c0_34] : memref<1x1xf32, #tpu.memory_space<smem>>
    %128 = vector.broadcast %127 : f32 to vector<128x1xf32>
    %129 = arith.addf %126, %128 : vector<128x1xf32>
    %130 = arith.addf %121, %129 : vector<128x1xf32>
    %cst_35 = arith.constant 0.000000e+00 : f32
    %131 = vector.broadcast %cst_35 : f32 to vector<128x1xf32>
    %132 = arith.maximumf %130, %131 : vector<128x1xf32>
    %133 = tpu.iota {dimensions = array<i32: 0>} : vector<128x128xi32>
    %134 = tpu.iota {dimensions = array<i32: 1>} : vector<128x128xi32>
    %135 = arith.cmpi eq, %133, %134 : vector<128x128xi32>
    %136 = arith.extui %135 : vector<128x128xi1> to vector<128x128xi32>
    %137 = arith.sitofp %136 : vector<128x128xi32> to vector<128x128xf32>
    %138 = vector.broadcast %132 : vector<128x1xf32> to vector<128x128xf32>
    %139 = arith.mulf %138, %137 : vector<128x128xf32>
    %cst_36 = arith.constant dense<0.000000e+00> : vector<128xf32>
    %140 = vector.multi_reduction <add>, %139, %cst_36 [0] : vector<128x128xf32> to vector<128xf32>
    %141 = vector.shape_cast %140 : vector<128xf32> to vector<1x128xf32>
    %142 = vector.broadcast %132 : vector<128x1xf32> to vector<128x128xf32>
    %143 = vector.broadcast %141 : vector<1x128xf32> to vector<128x128xf32>
    %144 = arith.cmpf ogt, %142, %143 : vector<128x128xf32>
    %145 = vector.broadcast %132 : vector<128x1xf32> to vector<128x128xf32>
    %146 = vector.broadcast %141 : vector<1x128xf32> to vector<128x128xf32>
    %147 = arith.cmpf oeq, %145, %146 : vector<128x128xf32>
    %148 = arith.cmpi slt, %133, %134 : vector<128x128xi32>
    %149 = arith.andi %147, %148 : vector<128x128xi1>
    %150 = arith.ori %144, %149 : vector<128x128xi1>
    %151 = arith.extui %150 : vector<128x128xi1> to vector<128x128xi32>
    %152 = arith.sitofp %151 : vector<128x128xi32> to vector<128x128xf32>
    %cst_37 = arith.constant dense<0.000000e+00> : vector<128xf32>
    %153 = vector.multi_reduction <add>, %152, %cst_37 [0] : vector<128x128xf32> to vector<128xf32>
    %154 = vector.shape_cast %153 : vector<128xf32> to vector<1x128xf32>
    %155 = tpu.iota {dimensions = array<i32: 0>} : vector<64x128xi32>
    %156 = arith.sitofp %155 : vector<64x128xi32> to vector<64x128xf32>
    %157 = vector.broadcast %154 : vector<1x128xf32> to vector<64x128xf32>
    %158 = arith.cmpf oeq, %157, %156 : vector<64x128xf32>
    %159 = arith.extui %158 : vector<64x128xi1> to vector<64x128xi32>
    %160 = arith.sitofp %159 : vector<64x128xi32> to vector<64x128xf32>
    %cst_38 = arith.constant dense<0.000000e+00> : vector<64x64xf32>
    %161 = tpu.matmul %160, %1, %cst_38 {dimension_numbers = #tpu.dot_dimension_numbers<[1], [0], [0], [1], [0, 0, 1, 1], [], []>} : vector<64x128xf32>, vector<128x64xf32>, vector<64x64xf32> -> vector<64x64xf32>
    %162 = vector.broadcast %141 : vector<1x128xf32> to vector<64x128xf32>
    %163 = arith.mulf %160, %162 : vector<64x128xf32>
    %cst_39 = arith.constant dense<0.000000e+00> : vector<64xf32>
    %164 = vector.multi_reduction <add>, %163, %cst_39 [1] : vector<64x128xf32> to vector<64xf32>
    %165 = vector.shape_cast %164 : vector<64xf32> to vector<64x1xf32>
    %166 = math.tanh %165 : vector<64x1xf32>
    %167 = vector.broadcast %166 : vector<64x1xf32> to vector<64x64xf32>
    %168 = arith.mulf %161, %167 : vector<64x64xf32>
    %c0_40 = arith.constant 0 : index
    %c0_41 = arith.constant 0 : index
    %c0_42 = arith.constant 0 : index
    %169 = vector.load %arg6[%c0_40, %c0_41, %c0_42] : memref<1x64x64xf32, #tpu.memory_space<vmem>>, vector<1x64x64xf32>
    %170 = vector.shape_cast %169 : vector<1x64x64xf32> to vector<64x64xf32>
    %171 = vector.shape_cast %168 : vector<64x64xf32> to vector<1x64x64xf32>
    tpu.vector_store %arg6[%c0_40, %c0_41, %c0_42], %171 {strides = array<i32>} : memref<1x64x64xf32, #tpu.memory_space<vmem>>, vector<1x64x64xf32>,
    return
  }
  func.func @transform_0(%arg0: i32) -> (i32, i32, i32) {
    %c0_i32 = arith.constant 0 : i32
    %c0_i32_0 = arith.constant 0 : i32
    %c0_i32_1 = arith.constant 0 : i32
    return %arg0, %c0_i32, %c0_i32_0 : i32, i32, i32
  }
  func.func @transform_1(%arg0: i32) -> (i32, i32, i32) {
    %c0_i32 = arith.constant 0 : i32
    %c0_i32_0 = arith.constant 0 : i32
    %c0_i32_1 = arith.constant 0 : i32
    return %arg0, %c0_i32, %c0_i32_0 : i32, i32, i32
  }
  func.func @transform_2(%arg0: i32) -> (i32, i32) {
    %c0_i32 = arith.constant 0 : i32
    %c0_i32_0 = arith.constant 0 : i32
    %c0_i32_1 = arith.constant 0 : i32
    return %c0_i32, %c0_i32_0 : i32, i32
  }
  func.func @transform_3(%arg0: i32) -> (i32, i32) {
    %c0_i32 = arith.constant 0 : i32
    %c0_i32_0 = arith.constant 0 : i32
    %c0_i32_1 = arith.constant 0 : i32
    return %c0_i32, %c0_i32_0 : i32, i32
  }
  func.func @transform_4(%arg0: i32) -> (i32, i32) {
    %c0_i32 = arith.constant 0 : i32
    %c0_i32_0 = arith.constant 0 : i32
    %c0_i32_1 = arith.constant 0 : i32
    return %c0_i32, %c0_i32_0 : i32, i32
  }
  func.func @transform_5(%arg0: i32) -> (i32, i32, i32) {
    %c0_i32 = arith.constant 0 : i32
    %c0_i32_0 = arith.constant 0 : i32
    %c0_i32_1 = arith.constant 0 : i32
    return %arg0, %c0_i32, %c0_i32_0 : i32, i32, i32
  }
}

</mosaic_0001>

<llo_original>
// kernel: edge_pooling_forward.1
$region0: #{edge_pooling_forward.1}
  #allocation0 [shape = 'u32[]', space=smem, size = 0x4, offset = 0x4, fixed_abs, tag = 'smem constant byte address 0x4 - core index']
  #allocation1 [shape = 'u32[144,128]{1,0:T(1,128)}', space=vmem, size = 0x12000, scoped, tag = 'internal scratch']
  #allocation2 [shape = 'f32[1,1]{1,0:T(1,128)S(6)}', space=smem, size = 0x200, scoped, tag = 'scoped memory for edge_pooling_forward.1']
  %s0 = inlined_call_operand.vmem [shape: f32[2,128,64], index: 0, kind: input, shape index: {}]
  %s1 = inlined_call_operand.vmem [shape: f32[2,64,128], index: 1, kind: input, shape index: {}]
  %s2 = inlined_call_operand.vmem [shape: f32[64,1], index: 2, kind: input, shape index: {}]
  %s3 = inlined_call_operand.vmem [shape: f32[1,64], index: 3, kind: input, shape index: {}]
  %s4 = inlined_call_operand.<no memory space> [shape: f32[1,1], index: 4, kind: input, shape index: {}]
  %s5 = inlined_call_operand.hbm [shape: f32[2,64,64], index: 5, kind: output, shape index: {}]
  %s6 = sld [smem:[#allocation0]]
  $region53: #{edge_pooling_forward.1} parent=0
    _
  %s8 = ssub.s32 1, %s6
  %s9 = scalar_select 0, %s8, %s6
  %10 = sst [smem:[#allocation2]] %s4
  $region1: #{edge_pooling_forward.1} parent=0
    #allocation3 [shape = 'u8[65536]{0}', space=vmem, size = 0x10000, scoped, tag = 'output window, operand 0']
    #allocation4 [shape = 's32[2]{0}', space=sflag, size = 0x8, scoped, tag = 'scoped memory for edge_pooling_forward.1']
    %11 = vsyncpa [#allocation4], 0
    %s12 = scalar_lea.sflag [#allocation4], 1
    %13 = vsyncpa %s12, 0
    loop: start=0, step=1, limit=4
    $region2: #{edge_pooling_forward.1} parent=1 // loop_pre_header
      _
    $region3: #{edge_pooling_forward.1} parent=1 // loop_header
      %s15 = sphi 0, %s19
      %p16 = scmp.ge.s32.totalorder %s15, 4
      %s25 = sphi 0, %s27
      %s28 = sphi 0, %s25
      %s29 = sphi 0, %s28
      %s45 = sphi 0, %s29
      %s51 = sphi 0, %s53
      %s54 = sphi 0, %s51
      %s55 = sphi 0, %s54
      %s71 = sphi 0, %s55
      %s75 = sphi 0, %s75
      %s77 = sphi 0, %s75
      %s78 = sphi 0, %s77
      %s92 = sphi 0, %s78
      %s96 = sphi 0, %s96
      %s98 = sphi 0, %s96
      %s99 = sphi 0, %s98
      %s113 = sphi 0, %s99
      %s117 = sphi 0, %s117
      %s119 = sphi 0, %s117
      %s120 = sphi 0, %s119
      %s134 = sphi 0, %s120
      %s140 = sphi 0, %s142
      %s143 = sphi 0, %s140
      %s144 = sphi 0, %s143
      %s160 = sphi 0, %s144
    $region4: #{edge_pooling_forward.1} parent=1 // loop_header_branch
      %18 = sbr.rel (%p16) target = $region8
    $region5: #{edge_pooling_forward.1} parent=1 // loop_body
      %s20 = ssub.s32 %s15, 1
      %s21 = ssub.s32 %s15, 2
      %s22 = sadd.s32 %s15, 1
      %s23 = ssub.s32 %s15, %s22
      %p24 = scmp.eq.s32.totalorder %s23, 0
      %s26 = sadd.s32 %s25, 1
      %s27 = scalar_select %p24, %s25, %s26
      %p30 = pneg %p24
      %p31 = scmp.eq.s32.totalorder %s15, 1
      %p32 = por %p30, %p31
      %p33 = scmp.ne.s32.totalorder %s25, %s28
      %p34 = scmp.eq.s32.totalorder %s15, 0
      %p35 = por %p33, %p34
      %p36 = scmp.ne.s32.totalorder %s25, %s28
      %p37 = scmp.eq.s32.totalorder %s20, 1
      %p38 = por %p36, %p37
      %p39 = scmp.ne.s32.totalorder %s28, %s29
      %p40 = scmp.eq.s32.totalorder %s20, 0
      %p41 = por %p39, %p40
      %p42 = scmp.ne.s32.totalorder %s28, %s29
      %p43 = scmp.eq.s32.totalorder %s21, 1
      %p44 = por %p42, %p43
      %p46 = scmp.ne.s32.totalorder %s29, %s45
      %p47 = scmp.eq.s32.totalorder %s21, 0
      %p48 = por %p46, %p47
      %s49 = ssub.s32 %s15, %s22
      %p50 = scmp.eq.s32.totalorder %s49, 0
      %s52 = sadd.s32 %s51, 1
      %s53 = scalar_select %p50, %s51, %s52
      %p56 = pneg %p50
      %p57 = scmp.eq.s32.totalorder %s15, 1
      %p58 = por %p56, %p57
      %p59 = scmp.ne.s32.totalorder %s51, %s54
      %p60 = scmp.eq.s32.totalorder %s15, 0
      %p61 = por %p59, %p60
      %p62 = scmp.ne.s32.totalorder %s51, %s54
      %p63 = scmp.eq.s32.totalorder %s20, 1
      %p64 = por %p62, %p63
      %p65 = scmp.ne.s32.totalorder %s54, %s55
      %p66 = scmp.eq.s32.totalorder %s20, 0
      %p67 = por %p65, %p66
      %p68 = scmp.ne.s32.totalorder %s54, %s55
      %p69 = scmp.eq.s32.totalorder %s21, 1
      %p70 = por %p68, %p69
      %p72 = scmp.ne.s32.totalorder %s55, %s71
      %p73 = scmp.eq.s32.totalorder %s21, 0
      %p74 = por %p72, %p73
      %s76 = sadd.s32 %s75, 1
      %p79 = scmp.eq.s32.totalorder %s15, 1
      %p80 = scmp.ne.s32.totalorder %s75, %s77
      %p81 = scmp.eq.s32.totalorder %s15, 0
      %p82 = por %p80, %p81
      %p83 = scmp.ne.s32.totalorder %s75, %s77
      %p84 = scmp.eq.s32.totalorder %s20, 1
      %p85 = por %p83, %p84
      %p86 = scmp.ne.s32.totalorder %s77, %s78
      %p87 = scmp.eq.s32.totalorder %s20, 0
      %p88 = por %p86, %p87
      %p89 = scmp.ne.s32.totalorder %s77, %s78
      %p90 = scmp.eq.s32.totalorder %s21, 1
      %p91 = por %p89, %p90
      %p93 = scmp.ne.s32.totalorder %s78, %s92
      %p94 = scmp.eq.s32.totalorder %s21, 0
      %p95 = por %p93, %p94
      %s97 = sadd.s32 %s96, 1
      %p100 = scmp.eq.s32.totalorder %s15, 1
      %p101 = scmp.ne.s32.totalorder %s96, %s98
      %p102 = scmp.eq.s32.totalorder %s15, 0
      %p103 = por %p101, %p102
      %p104 = scmp.ne.s32.totalorder %s96, %s98
      %p105 = scmp.eq.s32.totalorder %s20, 1
      %p106 = por %p104, %p105
      %p107 = scmp.ne.s32.totalorder %s98, %s99
      %p108 = scmp.eq.s32.totalorder %s20, 0
      %p109 = por %p107, %p108
      %p110 = scmp.ne.s32.totalorder %s98, %s99
      %p111 = scmp.eq.s32.totalorder %s21, 1
      %p112 = por %p110, %p111
      %p114 = scmp.ne.s32.totalorder %s99, %s113
      %p115 = scmp.eq.s32.totalorder %s21, 0
      %p116 = por %p114, %p115
      %s118 = sadd.s32 %s117, 1
      %p121 = scmp.eq.s32.totalorder %s15, 1
      %p122 = scmp.ne.s32.totalorder %s117, %s119
      %p123 = scmp.eq.s32.totalorder %s15, 0
      %p124 = por %p122, %p123
      %p125 = scmp.ne.s32.totalorder %s117, %s119
      %p126 = scmp.eq.s32.totalorder %s20, 1
      %p127 = por %p125, %p126
      %p128 = scmp.ne.s32.totalorder %s119, %s120
      %p129 = scmp.eq.s32.totalorder %s20, 0
      %p130 = por %p128, %p129
      %p131 = scmp.ne.s32.totalorder %s119, %s120
      %p132 = scmp.eq.s32.totalorder %s21, 1
      %p133 = por %p131, %p132
      %p135 = scmp.ne.s32.totalorder %s120, %s134
      %p136 = scmp.eq.s32.totalorder %s21, 0
      %p137 = por %p135, %p136
      %s138 = ssub.s32 %s15, %s22
      %p139 = scmp.eq.s32.totalorder %s138, 0
      %s141 = sadd.s32 %s140, 1
      %s142 = scalar_select %p139, %s140, %s141
      %p145 = pneg %p139
      %p146 = scmp.eq.s32.totalorder %s15, 1
      %p147 = por %p145, %p146
      %p148 = scmp.ne.s32.totalorder %s140, %s143
      %p149 = scmp.eq.s32.totalorder %s15, 0
      %p150 = por %p148, %p149
      %p151 = scmp.ne.s32.totalorder %s140, %s143
      %p152 = scmp.eq.s32.totalorder %s20, 1
      %p153 = por %p151, %p152
      %p154 = scmp.ne.s32.totalorder %s143, %s144
      %p155 = scmp.eq.s32.totalorder %s20, 0
      %p156 = por %p154, %p155
      %p157 = scmp.ne.s32.totalorder %s143, %s144
      %p158 = scmp.eq.s32.totalorder %s21, 1
      %p159 = por %p157, %p158
      %p161 = scmp.ne.s32.totalorder %s144, %s160
      %p162 = scmp.eq.s32.totalorder %s21, 0
      %p163 = por %p161, %p162
      %p164 = scmp.le.s32.totalorder 1, %s15
      %p165 = scmp.lt.s32.totalorder %s15, 3
      %p166 = pnand %p164, %p165
      %p167 = pneg %p166
      // Predicated region
      $region9: #{edge_pooling_forward.1} parent=5 // pred_check
        _
      $region10: #{edge_pooling_forward.1} parent=5 // pred_check_branch
        %169 = sbr.rel (%p166) target = $region12
      $region11: #{edge_pooling_forward.1} parent=5 // pred_region
        %s170 = ssub.s32 %s15, 1
        // Predicated region
        $region13: #{edge_pooling_forward.1} parent=11 // pred_check
          %p171 = pneg %p88
        $region14: #{edge_pooling_forward.1} parent=11 // pred_check_branch
          %173 = sbr.rel (%p171) target = $region16
        $region15: #{edge_pooling_forward.1} parent=11 // pred_region
          _
        $region16: #{edge_pooling_forward.1} parent=11 // pred_fallthru
          _
        // Predicated region
        $region17: #{edge_pooling_forward.1} parent=11 // pred_check
          %p174 = pneg %p109
        $region18: #{edge_pooling_forward.1} parent=11 // pred_check_branch
          %176 = sbr.rel (%p174) target = $region20
        $region19: #{edge_pooling_forward.1} parent=11 // pred_region
          _
        $region20: #{edge_pooling_forward.1} parent=11 // pred_fallthru
          _
        // Predicated region
        $region21: #{edge_pooling_forward.1} parent=11 // pred_check
          %p177 = pneg %p130
        $region22: #{edge_pooling_forward.1} parent=11 // pred_check_branch
          %179 = sbr.rel (%p177) target = $region24
        $region23: #{edge_pooling_forward.1} parent=11 // pred_region
          _
        $region24: #{edge_pooling_forward.1} parent=11 // pred_fallthru
          _
      $region12: #{edge_pooling_forward.1} parent=5 // pred_fallthru
        _
      %p180 = scmp.lt.s32.totalorder %s15, 2
      // Predicated region
      $region25: #{edge_pooling_forward.1} parent=5 // pred_check
        %p181 = pneg %p180
      $region26: #{edge_pooling_forward.1} parent=5 // pred_check_branch
        %183 = sbr.rel (%p181) target = $region28
      $region27: #{edge_pooling_forward.1} parent=5 // pred_region
        // Predicated region
        $region29: #{edge_pooling_forward.1} parent=27 // pred_check
          %p184 = pneg %p35
        $region30: #{edge_pooling_forward.1} parent=27 // pred_check_branch
          %186 = sbr.rel (%p184) target = $region32
        $region31: #{edge_pooling_forward.1} parent=27 // pred_region
          %p187 = scmp.lt.s32.totalorder %s15, 1
          %s188 = scalar_select %p187, %s15, 1
          %s189 = smul.addr %s188, 16
          %s190 = smul.addr %s189, 8
          %s191 = scalar_lea.vmem %s0, %s190
        $region32: #{edge_pooling_forward.1} parent=27 // pred_fallthru
          _
        // Predicated region
        $region33: #{edge_pooling_forward.1} parent=27 // pred_check
          %p192 = pneg %p61
        $region34: #{edge_pooling_forward.1} parent=27 // pred_check_branch
          %194 = sbr.rel (%p192) target = $region36
        $region35: #{edge_pooling_forward.1} parent=27 // pred_region
          %p195 = scmp.lt.s32.totalorder %s15, 1
          %s196 = scalar_select %p195, %s15, 1
          %s197 = smul.addr %s196, 8
          %s198 = smul.addr %s197, 8
          %s199 = scalar_lea.vmem %s1, %s198
        $region36: #{edge_pooling_forward.1} parent=27 // pred_fallthru
          _
      $region28: #{edge_pooling_forward.1} parent=5 // pred_fallthru
        _
      %p200 = scmp.le.s32.totalorder 1, %s15
      %p201 = scmp.lt.s32.totalorder %s15, 3
      %p202 = pnand %p200, %p201
      %p203 = pneg %p202
      // Predicated region
      $region37: #{edge_pooling_forward.1} parent=5 // pred_check
        _
      $region38: #{edge_pooling_forward.1} parent=5 // pred_check_branch
        %205 = sbr.rel (%p202) target = $region40
      $region39: #{edge_pooling_forward.1} parent=5 // pred_region
        %s206 = ssub.s32 %s15, 1
        %p207 = scmp.lt.s32.totalorder %s20, 1
        %s208 = scalar_select %p207, %s20, 1
        %s209 = smul.addr %s208, 16
        %s210 = smul.addr %s209, 8
        %s211 = scalar_lea.vmem %s0, %s210
        %p212 = pneg %p41
        %p213 = pneg %p38
        %p214 = scmp.lt.s32.totalorder %s20, 1
        %s215 = scalar_select %p214, %s20, 1
        %s216 = smul.addr %s215, 8
        %s217 = smul.addr %s216, 8
        %s218 = scalar_lea.vmem %s1, %s217
        %p219 = pneg %p67
        %p220 = pneg %p64
        %p221 = pneg %p88
        %p222 = pneg %p85
        %p223 = pneg %p109
        %p224 = pneg %p106
        %p225 = pneg %p130
        %p226 = pneg %p127
        %p227 = pneg %p156
        %p228 = pneg %p153
        %s229 = sand.u32 %s143, 1
        %s230 = scalar_lea.sflag [#allocation4], %s229
        %s231 = sand.u32 %s143, 1
        %s232 = smul.addr %s231, 64
        %s233 = scalar_lea.vmem [#allocation3], %s232
        %p234 = scmp.lt.s32.totalorder %s20, 1
        %s235 = scalar_select %p234, %s20, 1
        %s236 = smul.addr %s235, 16
        %s237 = smul.addr %s236, 8
        %s238 = scalar_lea.vmem %s0, %s237
        %p239 = scmp.lt.s32.totalorder %s20, 1
        %s240 = scalar_select %p239, %s20, 1
        %s241 = smul.addr %s240, 8
        %s242 = smul.addr %s241, 8
        %s243 = scalar_lea.vmem %s1, %s242
        %v244 = vld [vmem:[%s238] sm:$0xff]
        %v245 = vld [vmem:[%s238 + $0x8] sm:$0xff]
        %v246 = vld [vmem:[%s238 + $0x10] sm:$0xff]
        %v247 = vld [vmem:[%s238 + $0x18] sm:$0xff]
        %v248 = vld [vmem:[%s238 + $0x20] sm:$0xff]
        %v249 = vld [vmem:[%s238 + $0x28] sm:$0xff]
        %v250 = vld [vmem:[%s238 + $0x30] sm:$0xff]
        %v251 = vld [vmem:[%s238 + $0x38] sm:$0xff]
        %v252 = vld [vmem:[%s238 + $0x40] sm:$0xff]
        %v253 = vld [vmem:[%s238 + $0x48] sm:$0xff]
        %v254 = vld [vmem:[%s238 + $0x50] sm:$0xff]
        %v255 = vld [vmem:[%s238 + $0x58] sm:$0xff]
        %v256 = vld [vmem:[%s238 + $0x60] sm:$0xff]
        %v257 = vld [vmem:[%s238 + $0x68] sm:$0xff]
        %v258 = vld [vmem:[%s238 + $0x70] sm:$0xff]
        %v259 = vld [vmem:[%s238 + $0x78] sm:$0xff]
        %v260 = vld [vmem:[%s243] sm:$0xff]
        %v261 = vld [vmem:[%s243 + $0x8] sm:$0xff]
        %v262 = vld [vmem:[%s243 + $0x10] sm:$0xff]
        %v263 = vld [vmem:[%s243 + $0x18] sm:$0xff]
        %v264 = vld [vmem:[%s243 + $0x20] sm:$0xff]
        %v265 = vld [vmem:[%s243 + $0x28] sm:$0xff]
        %v266 = vld [vmem:[%s243 + $0x30] sm:$0xff]
        %v267 = vld [vmem:[%s243 + $0x38] sm:$0xff]
        %vm268 = vcmask 523264
        %v270 = vsel %vm268, %v244, 0
        %v273 = vsel %vm268, %v245, 0
        %v276 = vsel %vm268, %v246, 0
        %v279 = vsel %vm268, %v247, 0
        %v282 = vsel %vm268, %v248, 0
        %v285 = vsel %vm268, %v249, 0
        %v288 = vsel %vm268, %v250, 0
        %v291 = vsel %vm268, %v251, 0
        %v294 = vsel %vm268, %v252, 0
        %v297 = vsel %vm268, %v253, 0
        %v300 = vsel %vm268, %v254, 0
        %v303 = vsel %vm268, %v255, 0
        %v306 = vsel %vm268, %v256, 0
        %v309 = vsel %vm268, %v257, 0
        %v312 = vsel %vm268, %v258, 0
        %v315 = vsel %vm268, %v259, 0
        %317 = vmatprep.subr.mxu0 0.0
        %318 = vmatpush1.msra.mxu0 %v260
        %319 = vmatprep.subr.mxu0 0.0
        %320 = vmatpush1.msra.mxu0 %v261
        %321 = vmatprep.subr.mxu0 0.0
        %322 = vmatpush1.msra.mxu0 %v262
        %323 = vmatprep.subr.mxu0 0.0
        %324 = vmatpush1.msra.mxu0 %v263
        %325 = vmatprep.subr.mxu0 0.0
        %326 = vmatpush1.msra.mxu0 %v264
        %327 = vmatprep.subr.mxu0 0.0
        %328 = vmatpush1.msra.mxu0 %v265
        %329 = vmatprep.subr.mxu0 0.0
        %330 = vmatpush1.msra.mxu0 %v266
        %331 = vmatprep.subr.mxu0 0.0
        %332 = vmatpush1.msra.mxu0 %v267
        %333 = vmatprep.subr.mxu0 0.0
        %334 = vmatpush1.msra.mxu0 0.0
        %335 = vmatprep.subr.mxu0 0.0
        %336 = vmatpush1.msra.mxu0 0.0
        %337 = vmatprep.subr.mxu0 0.0
        %338 = vmatpush1.msra.mxu0 0.0
        %339 = vmatprep.subr.mxu0 0.0
        %340 = vmatpush1.msra.mxu0 0.0
        %341 = vmatprep.subr.mxu0 0.0
        %342 = vmatpush1.msra.mxu0 0.0
        %343 = vmatprep.subr.mxu0 0.0
        %344 = vmatpush1.msra.mxu0 0.0
        %345 = vmatprep.subr.mxu0 0.0
        %346 = vmatpush1.msra.mxu0 0.0
        %347 = vmatprep.subr.mxu0 0.0
        %348 = vmatpush1.msra.mxu0 0.0
        %349 = vmatprep.subr.mxu0 0.0
        %350 = vmatpush1.msra.mxu0 0.0
        %351 = vmatprep.subr.mxu0 0.0
        %352 = vmatpush1.msra.mxu0 0.0
        %353 = vmatprep.subr.mxu0 0.0
        %354 = vmatpush1.msra.mxu0 0.0
        %355 = vmatprep.subr.mxu0 0.0
        %356 = vmatpush1.msra.mxu0 0.0
        %357 = vmatprep.subr.mxu0 0.0
        %358 = vmatpush1.msra.mxu0 0.0
        %359 = vmatprep.subr.mxu0 0.0
        %360 = vmatpush1.msra.mxu0 0.0
        %361 = vmatprep.subr.mxu0 0.0
        %362 = vmatpush1.msra.mxu0 0.0
        %363 = vmatprep.subr.mxu0 0.0
        %364 = vmatpush1.msra.mxu0 0.0
        %365 = vmatprep.subr.mxu0 0.0
        %366 = vmatpush1.msra.mxu0 0.0
        %367 = vmatprep.subr.mxu0 0.0
        %368 = vmatpush1.msra.mxu0 0.0
        %369 = vmatprep.subr.mxu0 0.0
        %370 = vmatpush1.msra.mxu0 0.0
        %371 = vmatprep.subr.mxu0 0.0
        %372 = vmatpush1.msra.mxu0 0.0
        %373 = vmatprep.subr.mxu0 0.0
        %374 = vmatpush1.msra.mxu0 0.0
        %375 = vmatprep.subr.mxu0 0.0
        %376 = vmatpush1.msra.mxu0 0.0
        %377 = vmatprep.subr.mxu0 0.0
        %378 = vmatpush1.msra.mxu0 0.0
        %379 = vmatprep.subr.mxu0 0.0
        %380 = vmatpush1.msra.mxu0 0.0
        %381 = vmatprep.mubr.f32.mxu0 0.0
        %382 = vmatmul.mubr.f32.gmra.mrb[0].mxu0 %v270
        %v383 = vpop.f32.mrb[0].mxu0
        %v384 = vadd.f32 0.0, %v383
        %v385 = vpop.f32.mrb[0].mxu0
        %386 = vmatprep.mubr.f32.mxu0 0.0
        %387 = vmatmul.mubr.f32.gmra.mrb[0].mxu0 %v273
        %v388 = vpop.f32.mrb[0].mxu0
        %v389 = vadd.f32 0.0, %v388
        %v390 = vpop.f32.mrb[0].mxu0
        %391 = vmatprep.mubr.f32.mxu0 0.0
        %392 = vmatmul.mubr.f32.gmra.mrb[0].mxu0 %v276
        %v393 = vpop.f32.mrb[0].mxu0
        %v394 = vadd.f32 0.0, %v393
        %v395 = vpop.f32.mrb[0].mxu0
        %396 = vmatprep.mubr.f32.mxu0 0.0
        %397 = vmatmul.mubr.f32.gmra.mrb[0].mxu0 %v279
        %v398 = vpop.f32.mrb[0].mxu0
        %v399 = vadd.f32 0.0, %v398
        %v400 = vpop.f32.mrb[0].mxu0
        %401 = vmatprep.mubr.f32.mxu0 0.0
        %402 = vmatmul.mubr.f32.gmra.mrb[0].mxu0 %v282
        %v403 = vpop.f32.mrb[0].mxu0
        %v404 = vadd.f32 0.0, %v403
        %v405 = vpop.f32.mrb[0].mxu0
        %406 = vmatprep.mubr.f32.mxu0 0.0
        %407 = vmatmul.mubr.f32.gmra.mrb[0].mxu0 %v285
        %v408 = vpop.f32.mrb[0].mxu0
        %v409 = vadd.f32 0.0, %v408
        %v410 = vpop.f32.mrb[0].mxu0
        %411 = vmatprep.mubr.f32.mxu0 0.0
        %412 = vmatmul.mubr.f32.gmra.mrb[0].mxu0 %v288
        %v413 = vpop.f32.mrb[0].mxu0
        %v414 = vadd.f32 0.0, %v413
        %v415 = vpop.f32.mrb[0].mxu0
        %416 = vmatprep.mubr.f32.mxu0 0.0
        %417 = vmatmul.mubr.f32.gmra.mrb[0].mxu0 %v291
        %v418 = vpop.f32.mrb[0].mxu0
        %v419 = vadd.f32 0.0, %v418
        %v420 = vpop.f32.mrb[0].mxu0
        %421 = vmatprep.mubr.f32.mxu0 0.0
        %422 = vmatmul.mubr.f32.gmra.mrb[0].mxu0 %v294
        %v423 = vpop.f32.mrb[0].mxu0
        %v424 = vadd.f32 0.0, %v423
        %v425 = vpop.f32.mrb[0].mxu0
        %426 = vmatprep.mubr.f32.mxu0 0.0
        %427 = vmatmul.mubr.f32.gmra.mrb[0].mxu0 %v297
        %v428 = vpop.f32.mrb[0].mxu0
        %v429 = vadd.f32 0.0, %v428
        %v430 = vpop.f32.mrb[0].mxu0
        %431 = vmatprep.mubr.f32.mxu0 0.0
        %432 = vmatmul.mubr.f32.gmra.mrb[0].mxu0 %v300
        %v433 = vpop.f32.mrb[0].mxu0
        %v434 = vadd.f32 0.0, %v433
        %v435 = vpop.f32.mrb[0].mxu0
        %436 = vmatprep.mubr.f32.mxu0 0.0
        %437 = vmatmul.mubr.f32.gmra.mrb[0].mxu0 %v303
        %v438 = vpop.f32.mrb[0].mxu0
        %v439 = vadd.f32 0.0, %v438
        %v440 = vpop.f32.mrb[0].mxu0
        %441 = vmatprep.mubr.f32.mxu0 0.0
        %442 = vmatmul.mubr.f32.gmra.mrb[0].mxu0 %v306
        %v443 = vpop.f32.mrb[0].mxu0
        %v444 = vadd.f32 0.0, %v443
        %v445 = vpop.f32.mrb[0].mxu0
        %446 = vmatprep.mubr.f32.mxu0 0.0
        %447 = vmatmul.mubr.f32.gmra.mrb[0].mxu0 %v309
        %v448 = vpop.f32.mrb[0].mxu0
        %v449 = vadd.f32 0.0, %v448
        %v450 = vpop.f32.mrb[0].mxu0
        %451 = vmatprep.mubr.f32.mxu0 0.0
        %452 = vmatmul.mubr.f32.gmra.mrb[0].mxu0 %v312
        %v453 = vpop.f32.mrb[0].mxu0
        %v454 = vadd.f32 0.0, %v453
        %v455 = vpop.f32.mrb[0].mxu0
        %456 = vmatprep.mubr.f32.mxu0 0.0
        %457 = vmatmul.mubr.f32.gmra.mrb[0].mxu0 %v315
        %v458 = vpop.f32.mrb[0].mxu0
        %v459 = vadd.f32 0.0, %v458
        %v460 = vpop.f32.mrb[0].mxu0
        %461 = vdwg.mxu0
        %v462 = vmul.f32 %v260, %v260
        %v463 = vmul.f32 %v261, %v261
        %v464 = vmul.f32 %v262, %v262
        %v465 = vmul.f32 %v263, %v263
        %v466 = vmul.f32 %v264, %v264
        %v467 = vmul.f32 %v265, %v265
        %v468 = vmul.f32 %v266, %v266
        %v469 = vmul.f32 %v267, %v267
        %v470 = vadd.f32 %v462, %v463
        %v471 = vadd.f32 %v470, %v464
        %v472 = vadd.f32 %v471, %v465
        %v473 = vadd.f32 %v472, %v466
        %v474 = vadd.f32 %v473, %v467
        %v475 = vadd.f32 %v474, %v468
        %v476 = vadd.f32 %v475, %v469
        %v477 = vrot.slane %v476, 4
        %v478 = vadd.f32 %v476, %v477
        %v479 = vrot.slane %v478, 2
        %v480 = vadd.f32 %v478, %v479
        %v481 = vrot.slane %v480, 1
        %v482 = vadd.f32 %v480, %v481
        %v483 = vmul.f32 %v384, 2.0
        %v484 = vmul.f32 %v389, 2.0
        %v485 = vmul.f32 %v394, 2.0
        %v486 = vmul.f32 %v399, 2.0
        %v487 = vmul.f32 %v404, 2.0
        %v488 = vmul.f32 %v409, 2.0
        %v489 = vmul.f32 %v414, 2.0
        %v490 = vmul.f32 %v419, 2.0
        %v491 = vmul.f32 %v424, 2.0
        %v492 = vmul.f32 %v429, 2.0
        %v493 = vmul.f32 %v434, 2.0
        %v494 = vmul.f32 %v439, 2.0
        %v495 = vmul.f32 %v444, 2.0
        %v496 = vmul.f32 %v449, 2.0
        %v497 = vmul.f32 %v454, 2.0
        %v498 = vmul.f32 %v459, 2.0
        %v499 = vsub.f32 %v483, %v482
        %v500 = vsub.f32 %v484, %v482
        %v501 = vsub.f32 %v485, %v482
        %v502 = vsub.f32 %v486, %v482
        %v503 = vsub.f32 %v487, %v482
        %v504 = vsub.f32 %v488, %v482
        %v505 = vsub.f32 %v489, %v482
        %v506 = vsub.f32 %v490, %v482
        %v507 = vsub.f32 %v491, %v482
        %v508 = vsub.f32 %v492, %v482
        %v509 = vsub.f32 %v493, %v482
        %v510 = vsub.f32 %v494, %v482
        %v511 = vsub.f32 %v495, %v482
        %v512 = vsub.f32 %v496, %v482
        %v513 = vsub.f32 %v497, %v482
        %v514 = vsub.f32 %v498, %v482
        %v515 = vld [vmem:[%s2] sm:$0xff]
        %v516 = vld [vmem:[%s2 + $0x8] sm:$0xff]
        %v517 = vld [vmem:[%s2 + $0x10] sm:$0xff]
        %v518 = vld [vmem:[%s2 + $0x18] sm:$0xff]
        %v519 = vld [vmem:[%s2 + $0x20] sm:$0xff]
        %v520 = vld [vmem:[%s2 + $0x28] sm:$0xff]
        %v521 = vld [vmem:[%s2 + $0x30] sm:$0xff]
        %v522 = vld [vmem:[%s2 + $0x38] sm:$0xff]
        %524 = vset.pattern.permute.xlu0 0
        %525 = vperm.xlu0 %524, %v515
        %v526 = vpop.permute.xlu0 %525
        %529 = vset.pattern.permute.xlu0 0
        %530 = vperm.xlu0 %529, %v516
        %v531 = vpop.permute.xlu0 %530
        %534 = vset.pattern.permute.xlu0 0
        %535 = vperm.xlu0 %534, %v517
        %v536 = vpop.permute.xlu0 %535
        %539 = vset.pattern.permute.xlu0 0
        %540 = vperm.xlu0 %539, %v518
        %v541 = vpop.permute.xlu0 %540
        %544 = vset.pattern.permute.xlu0 0
        %545 = vperm.xlu0 %544, %v519
        %v546 = vpop.permute.xlu0 %545
        %549 = vset.pattern.permute.xlu0 0
        %550 = vperm.xlu0 %549, %v520
        %v551 = vpop.permute.xlu0 %550
        %554 = vset.pattern.permute.xlu0 0
        %555 = vperm.xlu0 %554, %v521
        %v556 = vpop.permute.xlu0 %555
        %559 = vset.pattern.permute.xlu0 0
        %560 = vperm.xlu0 %559, %v522
        %v561 = vpop.permute.xlu0 %560
        %v563 = vmul.f32 %v526, %v260
        %v564 = vmul.f32 %v531, %v261
        %v565 = vmul.f32 %v536, %v262
        %v566 = vmul.f32 %v541, %v263
        %v567 = vmul.f32 %v546, %v264
        %v568 = vmul.f32 %v551, %v265
        %v569 = vmul.f32 %v556, %v266
        %v570 = vmul.f32 %v561, %v267
        %v571 = vadd.f32 %v563, %v564
        %v572 = vadd.f32 %v571, %v565
        %v573 = vadd.f32 %v572, %v566
        %v574 = vadd.f32 %v573, %v567
        %v575 = vadd.f32 %v574, %v568
        %v576 = vadd.f32 %v575, %v569
        %v577 = vadd.f32 %v576, %v570
        %v578 = vrot.slane %v577, 4
        %v579 = vadd.f32 %v577, %v578
        %v580 = vrot.slane %v579, 2
        %v581 = vadd.f32 %v579, %v580
        %v582 = vrot.slane %v581, 1
        %v583 = vadd.f32 %v581, %v582
        %584 = vmax.xlane.f32.xlu0 %v499
        %v585 = vpop.xlane.xlu0 %584
        %586 = vmax.xlane.f32.xlu0 %v500
        %v587 = vpop.xlane.xlu0 %586
        %588 = vmax.xlane.f32.xlu0 %v501
        %v589 = vpop.xlane.xlu0 %588
        %590 = vmax.xlane.f32.xlu0 %v502
        %v591 = vpop.xlane.xlu0 %590
        %592 = vmax.xlane.f32.xlu0 %v503
        %v593 = vpop.xlane.xlu0 %592
        %594 = vmax.xlane.f32.xlu0 %v504
        %v595 = vpop.xlane.xlu0 %594
        %596 = vmax.xlane.f32.xlu0 %v505
        %v597 = vpop.xlane.xlu0 %596
        %598 = vmax.xlane.f32.xlu0 %v506
        %v599 = vpop.xlane.xlu0 %598
        %600 = vmax.xlane.f32.xlu0 %v507
        %v601 = vpop.xlane.xlu0 %600
        %602 = vmax.xlane.f32.xlu0 %v508
        %v603 = vpop.xlane.xlu0 %602
        %604 = vmax.xlane.f32.xlu0 %v509
        %v605 = vpop.xlane.xlu0 %604
        %606 = vmax.xlane.f32.xlu0 %v510
        %v607 = vpop.xlane.xlu0 %606
        %608 = vmax.xlane.f32.xlu0 %v511
        %v609 = vpop.xlane.xlu0 %608
        %610 = vmax.xlane.f32.xlu0 %v512
        %v611 = vpop.xlane.xlu0 %610
        %612 = vmax.xlane.f32.xlu0 %v513
        %v613 = vpop.xlane.xlu0 %612
        %614 = vmax.xlane.f32.xlu0 %v514
        %v615 = vpop.xlane.xlu0 %614
        %vm616 = vcmp.ge.f32.partialorder %v499, %v585
        %vm617 = vcmp.ge.f32.partialorder %v500, %v587
        %vm618 = vcmp.ge.f32.partialorder %v501, %v589
        %vm619 = vcmp.ge.f32.partialorder %v502, %v591
        %vm620 = vcmp.ge.f32.partialorder %v503, %v593
        %vm621 = vcmp.ge.f32.partialorder %v504, %v595
        %vm622 = vcmp.ge.f32.partialorder %v505, %v597
        %vm623 = vcmp.ge.f32.partialorder %v506, %v599
        %vm624 = vcmp.ge.f32.partialorder %v507, %v601
        %vm625 = vcmp.ge.f32.partialorder %v508, %v603
        %vm626 = vcmp.ge.f32.partialorder %v509, %v605
        %vm627 = vcmp.ge.f32.partialorder %v510, %v607
        %vm628 = vcmp.ge.f32.partialorder %v511, %v609
        %vm629 = vcmp.ge.f32.partialorder %v512, %v611
        %vm630 = vcmp.ge.f32.partialorder %v513, %v613
        %vm631 = vcmp.ge.f32.partialorder %v514, %v615
        %v632 = vsel %vm616, -inf, %v499
        %v633 = vsel %vm617, -inf, %v500
        %v634 = vsel %vm618, -inf, %v501
        %v635 = vsel %vm619, -inf, %v502
        %v636 = vsel %vm620, -inf, %v503
        %v637 = vsel %vm621, -inf, %v504
        %v638 = vsel %vm622, -inf, %v505
        %v639 = vsel %vm623, -inf, %v506
        %v640 = vsel %vm624, -inf, %v507
        %v641 = vsel %vm625, -inf, %v508
        %v642 = vsel %vm626, -inf, %v509
        %v643 = vsel %vm627, -inf, %v510
        %v644 = vsel %vm628, -inf, %v511
        %v645 = vsel %vm629, -inf, %v512
        %v646 = vsel %vm630, -inf, %v513
        %v647 = vsel %vm631, -inf, %v514
        %648 = vmax.xlane.f32.xlu0 %v632
        %v649 = vpop.xlane.xlu0 %648
        %650 = vmax.xlane.f32.xlu0 %v633
        %v651 = vpop.xlane.xlu0 %650
        %652 = vmax.xlane.f32.xlu0 %v634
        %v653 = vpop.xlane.xlu0 %652
        %654 = vmax.xlane.f32.xlu0 %v635
        %v655 = vpop.xlane.xlu0 %654
        %656 = vmax.xlane.f32.xlu0 %v636
        %v657 = vpop.xlane.xlu0 %656
        %658 = vmax.xlane.f32.xlu0 %v637
        %v659 = vpop.xlane.xlu0 %658
        %660 = vmax.xlane.f32.xlu0 %v638
        %v661 = vpop.xlane.xlu0 %660
        %662 = vmax.xlane.f32.xlu0 %v639
        %v663 = vpop.xlane.xlu0 %662
        %664 = vmax.xlane.f32.xlu0 %v640
        %v665 = vpop.xlane.xlu0 %664
        %666 = vmax.xlane.f32.xlu0 %v641
        %v667 = vpop.xlane.xlu0 %666
        %668 = vmax.xlane.f32.xlu0 %v642
        %v669 = vpop.xlane.xlu0 %668
        %670 = vmax.xlane.f32.xlu0 %v643
        %v671 = vpop.xlane.xlu0 %670
        %672 = vmax.xlane.f32.xlu0 %v644
        %v673 = vpop.xlane.xlu0 %672
        %674 = vmax.xlane.f32.xlu0 %v645
        %v675 = vpop.xlane.xlu0 %674
        %676 = vmax.xlane.f32.xlu0 %v646
        %v677 = vpop.xlane.xlu0 %676
        %678 = vmax.xlane.f32.xlu0 %v647
        %v679 = vpop.xlane.xlu0 %678
        %vm680 = vcmp.ge.f32.partialorder %v632, %v649
        %vm681 = vcmp.ge.f32.partialorder %v633, %v651
        %vm682 = vcmp.ge.f32.partialorder %v634, %v653
        %vm683 = vcmp.ge.f32.partialorder %v635, %v655
        %vm684 = vcmp.ge.f32.partialorder %v636, %v657
        %vm685 = vcmp.ge.f32.partialorder %v637, %v659
        %vm686 = vcmp.ge.f32.partialorder %v638, %v661
        %vm687 = vcmp.ge.f32.partialorder %v639, %v663
        %vm688 = vcmp.ge.f32.partialorder %v640, %v665
        %vm689 = vcmp.ge.f32.partialorder %v641, %v667
        %vm690 = vcmp.ge.f32.partialorder %v642, %v669
        %vm691 = vcmp.ge.f32.partialorder %v643, %v671
        %vm692 = vcmp.ge.f32.partialorder %v644, %v673
        %vm693 = vcmp.ge.f32.partialorder %v645, %v675
        %vm694 = vcmp.ge.f32.partialorder %v646, %v677
        %vm695 = vcmp.ge.f32.partialorder %v647, %v679
        %v696 = vsel %vm680, -inf, %v632
        %v697 = vsel %vm681, -inf, %v633
        %v698 = vsel %vm682, -inf, %v634
        %v699 = vsel %vm683, -inf, %v635
        %v700 = vsel %vm684, -inf, %v636
        %v701 = vsel %vm685, -inf, %v637
        %v702 = vsel %vm686, -inf, %v638
        %v703 = vsel %vm687, -inf, %v639
        %v704 = vsel %vm688, -inf, %v640
        %v705 = vsel %vm689, -inf, %v641
        %v706 = vsel %vm690, -inf, %v642
        %v707 = vsel %vm691, -inf, %v643
        %v708 = vsel %vm692, -inf, %v644
        %v709 = vsel %vm693, -inf, %v645
        %v710 = vsel %vm694, -inf, %v646
        %v711 = vsel %vm695, -inf, %v647
        %712 = vmax.xlane.f32.xlu0 %v696
        %v713 = vpop.xlane.xlu0 %712
        %714 = vmax.xlane.f32.xlu0 %v697
        %v715 = vpop.xlane.xlu0 %714
        %716 = vmax.xlane.f32.xlu0 %v698
        %v717 = vpop.xlane.xlu0 %716
        %718 = vmax.xlane.f32.xlu0 %v699
        %v719 = vpop.xlane.xlu0 %718
        %720 = vmax.xlane.f32.xlu0 %v700
        %v721 = vpop.xlane.xlu0 %720
        %722 = vmax.xlane.f32.xlu0 %v701
        %v723 = vpop.xlane.xlu0 %722
        %724 = vmax.xlane.f32.xlu0 %v702
        %v725 = vpop.xlane.xlu0 %724
        %726 = vmax.xlane.f32.xlu0 %v703
        %v727 = vpop.xlane.xlu0 %726
        %728 = vmax.xlane.f32.xlu0 %v704
        %v729 = vpop.xlane.xlu0 %728
        %730 = vmax.xlane.f32.xlu0 %v705
        %v731 = vpop.xlane.xlu0 %730
        %732 = vmax.xlane.f32.xlu0 %v706
        %v733 = vpop.xlane.xlu0 %732
        %734 = vmax.xlane.f32.xlu0 %v707
        %v735 = vpop.xlane.xlu0 %734
        %736 = vmax.xlane.f32.xlu0 %v708
        %v737 = vpop.xlane.xlu0 %736
        %738 = vmax.xlane.f32.xlu0 %v709
        %v739 = vpop.xlane.xlu0 %738
        %740 = vmax.xlane.f32.xlu0 %v710
        %v741 = vpop.xlane.xlu0 %740
        %742 = vmax.xlane.f32.xlu0 %v711
        %v743 = vpop.xlane.xlu0 %742
        %vm744 = vcmp.ge.f32.partialorder %v696, %v713
        %vm745 = vcmp.ge.f32.partialorder %v697, %v715
        %vm746 = vcmp.ge.f32.partialorder %v698, %v717
        %vm747 = vcmp.ge.f32.partialorder %v699, %v719
        %vm748 = vcmp.ge.f32.partialorder %v700, %v721
        %vm749 = vcmp.ge.f32.partialorder %v701, %v723
        %vm750 = vcmp.ge.f32.partialorder %v702, %v725
        %vm751 = vcmp.ge.f32.partialorder %v703, %v727
        %vm752 = vcmp.ge.f32.partialorder %v704, %v729
        %vm753 = vcmp.ge.f32.partialorder %v705, %v731
        %vm754 = vcmp.ge.f32.partialorder %v706, %v733
        %vm755 = vcmp.ge.f32.partialorder %v707, %v735
        %vm756 = vcmp.ge.f32.partialorder %v708, %v737
        %vm757 = vcmp.ge.f32.partialorder %v709, %v739
        %vm758 = vcmp.ge.f32.partialorder %v710, %v741
        %vm759 = vcmp.ge.f32.partialorder %v711, %v743
        %v760 = vsel %vm744, -inf, %v696
        %v761 = vsel %vm745, -inf, %v697
        %v762 = vsel %vm746, -inf, %v698
        %v763 = vsel %vm747, -inf, %v699
        %v764 = vsel %vm748, -inf, %v700
        %v765 = vsel %vm749, -inf, %v701
        %v766 = vsel %vm750, -inf, %v702
        %v767 = vsel %vm751, -inf, %v703
        %v768 = vsel %vm752, -inf, %v704
        %v769 = vsel %vm753, -inf, %v705
        %v770 = vsel %vm754, -inf, %v706
        %v771 = vsel %vm755, -inf, %v707
        %v772 = vsel %vm756, -inf, %v708
        %v773 = vsel %vm757, -inf, %v709
        %v774 = vsel %vm758, -inf, %v710
        %v775 = vsel %vm759, -inf, %v711
        %776 = vmax.xlane.f32.xlu0 %v760
        %v777 = vpop.xlane.xlu0 %776
        %778 = vmax.xlane.f32.xlu0 %v761
        %v779 = vpop.xlane.xlu0 %778
        %780 = vmax.xlane.f32.xlu0 %v762
        %v781 = vpop.xlane.xlu0 %780
        %782 = vmax.xlane.f32.xlu0 %v763
        %v783 = vpop.xlane.xlu0 %782
        %784 = vmax.xlane.f32.xlu0 %v764
        %v785 = vpop.xlane.xlu0 %784
        %786 = vmax.xlane.f32.xlu0 %v765
        %v787 = vpop.xlane.xlu0 %786
        %788 = vmax.xlane.f32.xlu0 %v766
        %v789 = vpop.xlane.xlu0 %788
        %790 = vmax.xlane.f32.xlu0 %v767
        %v791 = vpop.xlane.xlu0 %790
        %792 = vmax.xlane.f32.xlu0 %v768
        %v793 = vpop.xlane.xlu0 %792
        %794 = vmax.xlane.f32.xlu0 %v769
        %v795 = vpop.xlane.xlu0 %794
        %796 = vmax.xlane.f32.xlu0 %v770
        %v797 = vpop.xlane.xlu0 %796
        %798 = vmax.xlane.f32.xlu0 %v771
        %v799 = vpop.xlane.xlu0 %798
        %800 = vmax.xlane.f32.xlu0 %v772
        %v801 = vpop.xlane.xlu0 %800
        %802 = vmax.xlane.f32.xlu0 %v773
        %v803 = vpop.xlane.xlu0 %802
        %804 = vmax.xlane.f32.xlu0 %v774
        %v805 = vpop.xlane.xlu0 %804
        %806 = vmax.xlane.f32.xlu0 %v775
        %v807 = vpop.xlane.xlu0 %806
        %vm808 = vcmp.ge.f32.partialorder %v760, %v777
        %vm809 = vcmp.ge.f32.partialorder %v761, %v779
        %vm810 = vcmp.ge.f32.partialorder %v762, %v781
        %vm811 = vcmp.ge.f32.partialorder %v763, %v783
        %vm812 = vcmp.ge.f32.partialorder %v764, %v785
        %vm813 = vcmp.ge.f32.partialorder %v765, %v787
        %vm814 = vcmp.ge.f32.partialorder %v766, %v789
        %vm815 = vcmp.ge.f32.partialorder %v767, %v791
        %vm816 = vcmp.ge.f32.partialorder %v768, %v793
        %vm817 = vcmp.ge.f32.partialorder %v769, %v795
        %vm818 = vcmp.ge.f32.partialorder %v770, %v797
        %vm819 = vcmp.ge.f32.partialorder %v771, %v799
        %vm820 = vcmp.ge.f32.partialorder %v772, %v801
        %vm821 = vcmp.ge.f32.partialorder %v773, %v803
        %vm822 = vcmp.ge.f32.partialorder %v774, %v805
        %vm823 = vcmp.ge.f32.partialorder %v775, %v807
        %v824 = vsel %vm808, -inf, %v760
        %v825 = vsel %vm809, -inf, %v761
        %v826 = vsel %vm810, -inf, %v762
        %v827 = vsel %vm811, -inf, %v763
        %v828 = vsel %vm812, -inf, %v764
        %v829 = vsel %vm813, -inf, %v765
        %v830 = vsel %vm814, -inf, %v766
        %v831 = vsel %vm815, -inf, %v767
        %v832 = vsel %vm816, -inf, %v768
        %v833 = vsel %vm817, -inf, %v769
        %v834 = vsel %vm818, -inf, %v770
        %v835 = vsel %vm819, -inf, %v771
        %v836 = vsel %vm820, -inf, %v772
        %v837 = vsel %vm821, -inf, %v773
        %v838 = vsel %vm822, -inf, %v774
        %v839 = vsel %vm823, -inf, %v775
        %840 = vmax.xlane.f32.xlu0 %v824
        %v841 = vpop.xlane.xlu0 %840
        %842 = vmax.xlane.f32.xlu0 %v825
        %v843 = vpop.xlane.xlu0 %842
        %844 = vmax.xlane.f32.xlu0 %v826
        %v845 = vpop.xlane.xlu0 %844
        %846 = vmax.xlane.f32.xlu0 %v827
        %v847 = vpop.xlane.xlu0 %846
        %848 = vmax.xlane.f32.xlu0 %v828
        %v849 = vpop.xlane.xlu0 %848
        %850 = vmax.xlane.f32.xlu0 %v829
        %v851 = vpop.xlane.xlu0 %850
        %852 = vmax.xlane.f32.xlu0 %v830
        %v853 = vpop.xlane.xlu0 %852
        %854 = vmax.xlane.f32.xlu0 %v831
        %v855 = vpop.xlane.xlu0 %854
        %856 = vmax.xlane.f32.xlu0 %v832
        %v857 = vpop.xlane.xlu0 %856
        %858 = vmax.xlane.f32.xlu0 %v833
        %v859 = vpop.xlane.xlu0 %858
        %860 = vmax.xlane.f32.xlu0 %v834
        %v861 = vpop.xlane.xlu0 %860
        %862 = vmax.xlane.f32.xlu0 %v835
        %v863 = vpop.xlane.xlu0 %862
        %864 = vmax.xlane.f32.xlu0 %v836
        %v865 = vpop.xlane.xlu0 %864
        %866 = vmax.xlane.f32.xlu0 %v837
        %v867 = vpop.xlane.xlu0 %866
        %868 = vmax.xlane.f32.xlu0 %v838
        %v869 = vpop.xlane.xlu0 %868
        %870 = vmax.xlane.f32.xlu0 %v839
        %v871 = vpop.xlane.xlu0 %870
        %vm872 = vcmp.ge.f32.partialorder %v824, %v841
        %vm873 = vcmp.ge.f32.partialorder %v825, %v843
        %vm874 = vcmp.ge.f32.partialorder %v826, %v845
        %vm875 = vcmp.ge.f32.partialorder %v827, %v847
        %vm876 = vcmp.ge.f32.partialorder %v828, %v849
        %vm877 = vcmp.ge.f32.partialorder %v829, %v851
        %vm878 = vcmp.ge.f32.partialorder %v830, %v853
        %vm879 = vcmp.ge.f32.partialorder %v831, %v855
        %vm880 = vcmp.ge.f32.partialorder %v832, %v857
        %vm881 = vcmp.ge.f32.partialorder %v833, %v859
        %vm882 = vcmp.ge.f32.partialorder %v834, %v861
        %vm883 = vcmp.ge.f32.partialorder %v835, %v863
        %vm884 = vcmp.ge.f32.partialorder %v836, %v865
        %vm885 = vcmp.ge.f32.partialorder %v837, %v867
        %vm886 = vcmp.ge.f32.partialorder %v838, %v869
        %vm887 = vcmp.ge.f32.partialorder %v839, %v871
        %v888 = vsel %vm872, -inf, %v824
        %v889 = vsel %vm873, -inf, %v825
        %v890 = vsel %vm874, -inf, %v826
        %v891 = vsel %vm875, -inf, %v827
        %v892 = vsel %vm876, -inf, %v828
        %v893 = vsel %vm877, -inf, %v829
        %v894 = vsel %vm878, -inf, %v830
        %v895 = vsel %vm879, -inf, %v831
        %v896 = vsel %vm880, -inf, %v832
        %v897 = vsel %vm881, -inf, %v833
        %v898 = vsel %vm882, -inf, %v834
        %v899 = vsel %vm883, -inf, %v835
        %v900 = vsel %vm884, -inf, %v836
        %v901 = vsel %vm885, -inf, %v837
        %v902 = vsel %vm886, -inf, %v838
        %v903 = vsel %vm887, -inf, %v839
        %904 = vmax.xlane.f32.xlu0 %v888
        %v905 = vpop.xlane.xlu0 %904
        %906 = vmax.xlane.f32.xlu0 %v889
        %v907 = vpop.xlane.xlu0 %906
        %908 = vmax.xlane.f32.xlu0 %v890
        %v909 = vpop.xlane.xlu0 %908
        %910 = vmax.xlane.f32.xlu0 %v891
        %v911 = vpop.xlane.xlu0 %910
        %912 = vmax.xlane.f32.xlu0 %v892
        %v913 = vpop.xlane.xlu0 %912
        %914 = vmax.xlane.f32.xlu0 %v893
        %v915 = vpop.xlane.xlu0 %914
        %916 = vmax.xlane.f32.xlu0 %v894
        %v917 = vpop.xlane.xlu0 %916
        %918 = vmax.xlane.f32.xlu0 %v895
        %v919 = vpop.xlane.xlu0 %918
        %920 = vmax.xlane.f32.xlu0 %v896
        %v921 = vpop.xlane.xlu0 %920
        %922 = vmax.xlane.f32.xlu0 %v897
        %v923 = vpop.xlane.xlu0 %922
        %924 = vmax.xlane.f32.xlu0 %v898
        %v925 = vpop.xlane.xlu0 %924
        %926 = vmax.xlane.f32.xlu0 %v899
        %v927 = vpop.xlane.xlu0 %926
        %928 = vmax.xlane.f32.xlu0 %v900
        %v929 = vpop.xlane.xlu0 %928
        %930 = vmax.xlane.f32.xlu0 %v901
        %v931 = vpop.xlane.xlu0 %930
        %932 = vmax.xlane.f32.xlu0 %v902
        %v933 = vpop.xlane.xlu0 %932
        %934 = vmax.xlane.f32.xlu0 %v903
        %v935 = vpop.xlane.xlu0 %934
        %vm936 = vcmp.ge.f32.partialorder %v888, %v905
        %vm937 = vcmp.ge.f32.partialorder %v889, %v907
        %vm938 = vcmp.ge.f32.partialorder %v890, %v909
        %vm939 = vcmp.ge.f32.partialorder %v891, %v911
        %vm940 = vcmp.ge.f32.partialorder %v892, %v913
        %vm941 = vcmp.ge.f32.partialorder %v893, %v915
        %vm942 = vcmp.ge.f32.partialorder %v894, %v917
        %vm943 = vcmp.ge.f32.partialorder %v895, %v919
        %vm944 = vcmp.ge.f32.partialorder %v896, %v921
        %vm945 = vcmp.ge.f32.partialorder %v897, %v923
        %vm946 = vcmp.ge.f32.partialorder %v898, %v925
        %vm947 = vcmp.ge.f32.partialorder %v899, %v927
        %vm948 = vcmp.ge.f32.partialorder %v900, %v929
        %vm949 = vcmp.ge.f32.partialorder %v901, %v931
        %vm950 = vcmp.ge.f32.partialorder %v902, %v933
        %vm951 = vcmp.ge.f32.partialorder %v903, %v935
        %v952 = vsel %vm936, -inf, %v888
        %v953 = vsel %vm937, -inf, %v889
        %v954 = vsel %vm938, -inf, %v890
        %v955 = vsel %vm939, -inf, %v891
        %v956 = vsel %vm940, -inf, %v892
        %v957 = vsel %vm941, -inf, %v893
        %v958 = vsel %vm942, -inf, %v894
        %v959 = vsel %vm943, -inf, %v895
        %v960 = vsel %vm944, -inf, %v896
        %v961 = vsel %vm945, -inf, %v897
        %v962 = vsel %vm946, -inf, %v898
        %v963 = vsel %vm947, -inf, %v899
        %v964 = vsel %vm948, -inf, %v900
        %v965 = vsel %vm949, -inf, %v901
        %v966 = vsel %vm950, -inf, %v902
        %v967 = vsel %vm951, -inf, %v903
        %968 = vmax.xlane.f32.xlu0 %v952
        %v969 = vpop.xlane.xlu0 %968
        %970 = vmax.xlane.f32.xlu0 %v953
        %v971 = vpop.xlane.xlu0 %970
        %972 = vmax.xlane.f32.xlu0 %v954
        %v973 = vpop.xlane.xlu0 %972
        %974 = vmax.xlane.f32.xlu0 %v955
        %v975 = vpop.xlane.xlu0 %974
        %976 = vmax.xlane.f32.xlu0 %v956
        %v977 = vpop.xlane.xlu0 %976
        %978 = vmax.xlane.f32.xlu0 %v957
        %v979 = vpop.xlane.xlu0 %978
        %980 = vmax.xlane.f32.xlu0 %v958
        %v981 = vpop.xlane.xlu0 %980
        %982 = vmax.xlane.f32.xlu0 %v959
        %v983 = vpop.xlane.xlu0 %982
        %984 = vmax.xlane.f32.xlu0 %v960
        %v985 = vpop.xlane.xlu0 %984
        %986 = vmax.xlane.f32.xlu0 %v961
        %v987 = vpop.xlane.xlu0 %986
        %988 = vmax.xlane.f32.xlu0 %v962
        %v989 = vpop.xlane.xlu0 %988
        %990 = vmax.xlane.f32.xlu0 %v963
        %v991 = vpop.xlane.xlu0 %990
        %992 = vmax.xlane.f32.xlu0 %v964
        %v993 = vpop.xlane.xlu0 %992
        %994 = vmax.xlane.f32.xlu0 %v965
        %v995 = vpop.xlane.xlu0 %994
        %996 = vmax.xlane.f32.xlu0 %v966
        %v997 = vpop.xlane.xlu0 %996
        %998 = vmax.xlane.f32.xlu0 %v967
        %v999 = vpop.xlane.xlu0 %998
        %vm1000 = vcmp.ge.f32.partialorder %v952, %v969
        %vm1001 = vcmp.ge.f32.partialorder %v953, %v971
        %vm1002 = vcmp.ge.f32.partialorder %v954, %v973
        %vm1003 = vcmp.ge.f32.partialorder %v955, %v975
        %vm1004 = vcmp.ge.f32.partialorder %v956, %v977
        %vm1005 = vcmp.ge.f32.partialorder %v957, %v979
        %vm1006 = vcmp.ge.f32.partialorder %v958, %v981
        %vm1007 = vcmp.ge.f32.partialorder %v959, %v983
        %vm1008 = vcmp.ge.f32.partialorder %v960, %v985
        %vm1009 = vcmp.ge.f32.partialorder %v961, %v987
        %vm1010 = vcmp.ge.f32.partialorder %v962, %v989
        %vm1011 = vcmp.ge.f32.partialorder %v963, %v991
        %vm1012 = vcmp.ge.f32.partialorder %v964, %v993
        %vm1013 = vcmp.ge.f32.partialorder %v965, %v995
        %vm1014 = vcmp.ge.f32.partialorder %v966, %v997
        %vm1015 = vcmp.ge.f32.partialorder %v967, %v999
        %v1016 = vsel %vm1000, -inf, %v952
        %v1017 = vsel %vm1001, -inf, %v953
        %v1018 = vsel %vm1002, -inf, %v954
        %v1019 = vsel %vm1003, -inf, %v955
        %v1020 = vsel %vm1004, -inf, %v956
        %v1021 = vsel %vm1005, -inf, %v957
        %v1022 = vsel %vm1006, -inf, %v958
        %v1023 = vsel %vm1007, -inf, %v959
        %v1024 = vsel %vm1008, -inf, %v960
        %v1025 = vsel %vm1009, -inf, %v961
        %v1026 = vsel %vm1010, -inf, %v962
        %v1027 = vsel %vm1011, -inf, %v963
        %v1028 = vsel %vm1012, -inf, %v964
        %v1029 = vsel %vm1013, -inf, %v965
        %v1030 = vsel %vm1014, -inf, %v966
        %v1031 = vsel %vm1015, -inf, %v967
        %1032 = vmax.xlane.f32.xlu0 %v1016
        %v1033 = vpop.xlane.xlu0 %1032
        %1034 = vmax.xlane.f32.xlu0 %v1017
        %v1035 = vpop.xlane.xlu0 %1034
        %1036 = vmax.xlane.f32.xlu0 %v1018
        %v1037 = vpop.xlane.xlu0 %1036
        %1038 = vmax.xlane.f32.xlu0 %v1019
        %v1039 = vpop.xlane.xlu0 %1038
        %1040 = vmax.xlane.f32.xlu0 %v1020
        %v1041 = vpop.xlane.xlu0 %1040
        %1042 = vmax.xlane.f32.xlu0 %v1021
        %v1043 = vpop.xlane.xlu0 %1042
        %1044 = vmax.xlane.f32.xlu0 %v1022
        %v1045 = vpop.xlane.xlu0 %1044
        %1046 = vmax.xlane.f32.xlu0 %v1023
        %v1047 = vpop.xlane.xlu0 %1046
        %1048 = vmax.xlane.f32.xlu0 %v1024
        %v1049 = vpop.xlane.xlu0 %1048
        %1050 = vmax.xlane.f32.xlu0 %v1025
        %v1051 = vpop.xlane.xlu0 %1050
        %1052 = vmax.xlane.f32.xlu0 %v1026
        %v1053 = vpop.xlane.xlu0 %1052
        %1054 = vmax.xlane.f32.xlu0 %v1027
        %v1055 = vpop.xlane.xlu0 %1054
        %1056 = vmax.xlane.f32.xlu0 %v1028
        %v1057 = vpop.xlane.xlu0 %1056
        %1058 = vmax.xlane.f32.xlu0 %v1029
        %v1059 = vpop.xlane.xlu0 %1058
        %1060 = vmax.xlane.f32.xlu0 %v1030
        %v1061 = vpop.xlane.xlu0 %1060
        %1062 = vmax.xlane.f32.xlu0 %v1031
        %v1063 = vpop.xlane.xlu0 %1062
        %vm1064 = vcmp.ge.f32.partialorder %v1016, %v1033
        %vm1065 = vcmp.ge.f32.partialorder %v1017, %v1035
        %vm1066 = vcmp.ge.f32.partialorder %v1018, %v1037
        %vm1067 = vcmp.ge.f32.partialorder %v1019, %v1039
        %vm1068 = vcmp.ge.f32.partialorder %v1020, %v1041
        %vm1069 = vcmp.ge.f32.partialorder %v1021, %v1043
        %vm1070 = vcmp.ge.f32.partialorder %v1022, %v1045
        %vm1071 = vcmp.ge.f32.partialorder %v1023, %v1047
        %vm1072 = vcmp.ge.f32.partialorder %v1024, %v1049
        %vm1073 = vcmp.ge.f32.partialorder %v1025, %v1051
        %vm1074 = vcmp.ge.f32.partialorder %v1026, %v1053
        %vm1075 = vcmp.ge.f32.partialorder %v1027, %v1055
        %vm1076 = vcmp.ge.f32.partialorder %v1028, %v1057
        %vm1077 = vcmp.ge.f32.partialorder %v1029, %v1059
        %vm1078 = vcmp.ge.f32.partialorder %v1030, %v1061
        %vm1079 = vcmp.ge.f32.partialorder %v1031, %v1063
        %v1080 = vsel %vm1064, -inf, %v1016
        %v1081 = vsel %vm1065, -inf, %v1017
        %v1082 = vsel %vm1066, -inf, %v1018
        %v1083 = vsel %vm1067, -inf, %v1019
        %v1084 = vsel %vm1068, -inf, %v1020
        %v1085 = vsel %vm1069, -inf, %v1021
        %v1086 = vsel %vm1070, -inf, %v1022
        %v1087 = vsel %vm1071, -inf, %v1023
        %v1088 = vsel %vm1072, -inf, %v1024
        %v1089 = vsel %vm1073, -inf, %v1025
        %v1090 = vsel %vm1074, -inf, %v1026
        %v1091 = vsel %vm1075, -inf, %v1027
        %v1092 = vsel %vm1076, -inf, %v1028
        %v1093 = vsel %vm1077, -inf, %v1029
        %v1094 = vsel %vm1078, -inf, %v1030
        %v1095 = vsel %vm1079, -inf, %v1031
        %1096 = vmax.xlane.f32.xlu0 %v1080
        %v1097 = vpop.xlane.xlu0 %1096
        %1098 = vmax.xlane.f32.xlu0 %v1081
        %v1099 = vpop.xlane.xlu0 %1098
        %1100 = vmax.xlane.f32.xlu0 %v1082
        %v1101 = vpop.xlane.xlu0 %1100
        %1102 = vmax.xlane.f32.xlu0 %v1083
        %v1103 = vpop.xlane.xlu0 %1102
        %1104 = vmax.xlane.f32.xlu0 %v1084
        %v1105 = vpop.xlane.xlu0 %1104
        %1106 = vmax.xlane.f32.xlu0 %v1085
        %v1107 = vpop.xlane.xlu0 %1106
        %1108 = vmax.xlane.f32.xlu0 %v1086
        %v1109 = vpop.xlane.xlu0 %1108
        %1110 = vmax.xlane.f32.xlu0 %v1087
        %v1111 = vpop.xlane.xlu0 %1110
        %1112 = vmax.xlane.f32.xlu0 %v1088
        %v1113 = vpop.xlane.xlu0 %1112
        %1114 = vmax.xlane.f32.xlu0 %v1089
        %v1115 = vpop.xlane.xlu0 %1114
        %1116 = vmax.xlane.f32.xlu0 %v1090
        %v1117 = vpop.xlane.xlu0 %1116
        %1118 = vmax.xlane.f32.xlu0 %v1091
        %v1119 = vpop.xlane.xlu0 %1118
        %1120 = vmax.xlane.f32.xlu0 %v1092
        %v1121 = vpop.xlane.xlu0 %1120
        %1122 = vmax.xlane.f32.xlu0 %v1093
        %v1123 = vpop.xlane.xlu0 %1122
        %1124 = vmax.xlane.f32.xlu0 %v1094
        %v1125 = vpop.xlane.xlu0 %1124
        %1126 = vmax.xlane.f32.xlu0 %v1095
        %v1127 = vpop.xlane.xlu0 %1126
        %vm1128 = vcmp.ge.f32.partialorder %v1080, %v1097
        %vm1129 = vcmp.ge.f32.partialorder %v1081, %v1099
        %vm1130 = vcmp.ge.f32.partialorder %v1082, %v1101
        %vm1131 = vcmp.ge.f32.partialorder %v1083, %v1103
        %vm1132 = vcmp.ge.f32.partialorder %v1084, %v1105
        %vm1133 = vcmp.ge.f32.partialorder %v1085, %v1107
        %vm1134 = vcmp.ge.f32.partialorder %v1086, %v1109
        %vm1135 = vcmp.ge.f32.partialorder %v1087, %v1111
        %vm1136 = vcmp.ge.f32.partialorder %v1088, %v1113
        %vm1137 = vcmp.ge.f32.partialorder %v1089, %v1115
        %vm1138 = vcmp.ge.f32.partialorder %v1090, %v1117
        %vm1139 = vcmp.ge.f32.partialorder %v1091, %v1119
        %vm1140 = vcmp.ge.f32.partialorder %v1092, %v1121
        %vm1141 = vcmp.ge.f32.partialorder %v1093, %v1123
        %vm1142 = vcmp.ge.f32.partialorder %v1094, %v1125
        %vm1143 = vcmp.ge.f32.partialorder %v1095, %v1127
        %v1144 = vsel %vm1128, -inf, %v1080
        %v1145 = vsel %vm1129, -inf, %v1081
        %v1146 = vsel %vm1130, -inf, %v1082
        %v1147 = vsel %vm1131, -inf, %v1083
        %v1148 = vsel %vm1132, -inf, %v1084
        %v1149 = vsel %vm1133, -inf, %v1085
        %v1150 = vsel %vm1134, -inf, %v1086
        %v1151 = vsel %vm1135, -inf, %v1087
        %v1152 = vsel %vm1136, -inf, %v1088
        %v1153 = vsel %vm1137, -inf, %v1089
        %v1154 = vsel %vm1138, -inf, %v1090
        %v1155 = vsel %vm1139, -inf, %v1091
        %v1156 = vsel %vm1140, -inf, %v1092
        %v1157 = vsel %vm1141, -inf, %v1093
        %v1158 = vsel %vm1142, -inf, %v1094
        %v1159 = vsel %vm1143, -inf, %v1095
        %1160 = vmax.xlane.f32.xlu0 %v1144
        %v1161 = vpop.xlane.xlu0 %1160
        %1162 = vmax.xlane.f32.xlu0 %v1145
        %v1163 = vpop.xlane.xlu0 %1162
        %1164 = vmax.xlane.f32.xlu0 %v1146
        %v1165 = vpop.xlane.xlu0 %1164
        %1166 = vmax.xlane.f32.xlu0 %v1147
        %v1167 = vpop.xlane.xlu0 %1166
        %1168 = vmax.xlane.f32.xlu0 %v1148
        %v1169 = vpop.xlane.xlu0 %1168
        %1170 = vmax.xlane.f32.xlu0 %v1149
        %v1171 = vpop.xlane.xlu0 %1170
        %1172 = vmax.xlane.f32.xlu0 %v1150
        %v1173 = vpop.xlane.xlu0 %1172
        %1174 = vmax.xlane.f32.xlu0 %v1151
        %v1175 = vpop.xlane.xlu0 %1174
        %1176 = vmax.xlane.f32.xlu0 %v1152
        %v1177 = vpop.xlane.xlu0 %1176
        %1178 = vmax.xlane.f32.xlu0 %v1153
        %v1179 = vpop.xlane.xlu0 %1178
        %1180 = vmax.xlane.f32.xlu0 %v1154
        %v1181 = vpop.xlane.xlu0 %1180
        %1182 = vmax.xlane.f32.xlu0 %v1155
        %v1183 = vpop.xlane.xlu0 %1182
        %1184 = vmax.xlane.f32.xlu0 %v1156
        %v1185 = vpop.xlane.xlu0 %1184
        %1186 = vmax.xlane.f32.xlu0 %v1157
        %v1187 = vpop.xlane.xlu0 %1186
        %1188 = vmax.xlane.f32.xlu0 %v1158
        %v1189 = vpop.xlane.xlu0 %1188
        %1190 = vmax.xlane.f32.xlu0 %v1159
        %v1191 = vpop.xlane.xlu0 %1190
        %vm1192 = vcmp.ge.f32.partialorder %v1144, %v1161
        %vm1193 = vcmp.ge.f32.partialorder %v1145, %v1163
        %vm1194 = vcmp.ge.f32.partialorder %v1146, %v1165
        %vm1195 = vcmp.ge.f32.partialorder %v1147, %v1167
        %vm1196 = vcmp.ge.f32.partialorder %v1148, %v1169
        %vm1197 = vcmp.ge.f32.partialorder %v1149, %v1171
        %vm1198 = vcmp.ge.f32.partialorder %v1150, %v1173
        %vm1199 = vcmp.ge.f32.partialorder %v1151, %v1175
        %vm1200 = vcmp.ge.f32.partialorder %v1152, %v1177
        %vm1201 = vcmp.ge.f32.partialorder %v1153, %v1179
        %vm1202 = vcmp.ge.f32.partialorder %v1154, %v1181
        %vm1203 = vcmp.ge.f32.partialorder %v1155, %v1183
        %vm1204 = vcmp.ge.f32.partialorder %v1156, %v1185
        %vm1205 = vcmp.ge.f32.partialorder %v1157, %v1187
        %vm1206 = vcmp.ge.f32.partialorder %v1158, %v1189
        %vm1207 = vcmp.ge.f32.partialorder %v1159, %v1191
        %v1208 = vsel %vm1192, -inf, %v1144
        %v1209 = vsel %vm1193, -inf, %v1145
        %v1210 = vsel %vm1194, -inf, %v1146
        %v1211 = vsel %vm1195, -inf, %v1147
        %v1212 = vsel %vm1196, -inf, %v1148
        %v1213 = vsel %vm1197, -inf, %v1149
        %v1214 = vsel %vm1198, -inf, %v1150
        %v1215 = vsel %vm1199, -inf, %v1151
        %v1216 = vsel %vm1200, -inf, %v1152
        %v1217 = vsel %vm1201, -inf, %v1153
        %v1218 = vsel %vm1202, -inf, %v1154
        %v1219 = vsel %vm1203, -inf, %v1155
        %v1220 = vsel %vm1204, -inf, %v1156
        %v1221 = vsel %vm1205, -inf, %v1157
        %v1222 = vsel %vm1206, -inf, %v1158
        %v1223 = vsel %vm1207, -inf, %v1159
        %1224 = vmax.xlane.f32.xlu0 %v1208
        %v1225 = vpop.xlane.xlu0 %1224
        %1226 = vmax.xlane.f32.xlu0 %v1209
        %v1227 = vpop.xlane.xlu0 %1226
        %1228 = vmax.xlane.f32.xlu0 %v1210
        %v1229 = vpop.xlane.xlu0 %1228
        %1230 = vmax.xlane.f32.xlu0 %v1211
        %v1231 = vpop.xlane.xlu0 %1230
        %1232 = vmax.xlane.f32.xlu0 %v1212
        %v1233 = vpop.xlane.xlu0 %1232
        %1234 = vmax.xlane.f32.xlu0 %v1213
        %v1235 = vpop.xlane.xlu0 %1234
        %1236 = vmax.xlane.f32.xlu0 %v1214
        %v1237 = vpop.xlane.xlu0 %1236
        %1238 = vmax.xlane.f32.xlu0 %v1215
        %v1239 = vpop.xlane.xlu0 %1238
        %1240 = vmax.xlane.f32.xlu0 %v1216
        %v1241 = vpop.xlane.xlu0 %1240
        %1242 = vmax.xlane.f32.xlu0 %v1217
        %v1243 = vpop.xlane.xlu0 %1242
        %1244 = vmax.xlane.f32.xlu0 %v1218
        %v1245 = vpop.xlane.xlu0 %1244
        %1246 = vmax.xlane.f32.xlu0 %v1219
        %v1247 = vpop.xlane.xlu0 %1246
        %1248 = vmax.xlane.f32.xlu0 %v1220
        %v1249 = vpop.xlane.xlu0 %1248
        %1250 = vmax.xlane.f32.xlu0 %v1221
        %v1251 = vpop.xlane.xlu0 %1250
        %1252 = vmax.xlane.f32.xlu0 %v1222
        %v1253 = vpop.xlane.xlu0 %1252
        %1254 = vmax.xlane.f32.xlu0 %v1223
        %v1255 = vpop.xlane.xlu0 %1254
        %vm1256 = vcmp.ge.f32.partialorder %v1208, %v1225
        %vm1257 = vcmp.ge.f32.partialorder %v1209, %v1227
        %vm1258 = vcmp.ge.f32.partialorder %v1210, %v1229
        %vm1259 = vcmp.ge.f32.partialorder %v1211, %v1231
        %vm1260 = vcmp.ge.f32.partialorder %v1212, %v1233
        %vm1261 = vcmp.ge.f32.partialorder %v1213, %v1235
        %vm1262 = vcmp.ge.f32.partialorder %v1214, %v1237
        %vm1263 = vcmp.ge.f32.partialorder %v1215, %v1239
        %vm1264 = vcmp.ge.f32.partialorder %v1216, %v1241
        %vm1265 = vcmp.ge.f32.partialorder %v1217, %v1243
        %vm1266 = vcmp.ge.f32.partialorder %v1218, %v1245
        %vm1267 = vcmp.ge.f32.partialorder %v1219, %v1247
        %vm1268 = vcmp.ge.f32.partialorder %v1220, %v1249
        %vm1269 = vcmp.ge.f32.partialorder %v1221, %v1251
        %vm1270 = vcmp.ge.f32.partialorder %v1222, %v1253
        %vm1271 = vcmp.ge.f32.partialorder %v1223, %v1255
        %v1272 = vsel %vm1256, -inf, %v1208
        %v1273 = vsel %vm1257, -inf, %v1209
        %v1274 = vsel %vm1258, -inf, %v1210
        %v1275 = vsel %vm1259, -inf, %v1211
        %v1276 = vsel %vm1260, -inf, %v1212
        %v1277 = vsel %vm1261, -inf, %v1213
        %v1278 = vsel %vm1262, -inf, %v1214
        %v1279 = vsel %vm1263, -inf, %v1215
        %v1280 = vsel %vm1264, -inf, %v1216
        %v1281 = vsel %vm1265, -inf, %v1217
        %v1282 = vsel %vm1266, -inf, %v1218
        %v1283 = vsel %vm1267, -inf, %v1219
        %v1284 = vsel %vm1268, -inf, %v1220
        %v1285 = vsel %vm1269, -inf, %v1221
        %v1286 = vsel %vm1270, -inf, %v1222
        %v1287 = vsel %vm1271, -inf, %v1223
        %1288 = vmax.xlane.f32.xlu0 %v1272
        %v1289 = vpop.xlane.xlu0 %1288
        %1290 = vmax.xlane.f32.xlu0 %v1273
        %v1291 = vpop.xlane.xlu0 %1290
        %1292 = vmax.xlane.f32.xlu0 %v1274
        %v1293 = vpop.xlane.xlu0 %1292
        %1294 = vmax.xlane.f32.xlu0 %v1275
        %v1295 = vpop.xlane.xlu0 %1294
        %1296 = vmax.xlane.f32.xlu0 %v1276
        %v1297 = vpop.xlane.xlu0 %1296
        %1298 = vmax.xlane.f32.xlu0 %v1277
        %v1299 = vpop.xlane.xlu0 %1298
        %1300 = vmax.xlane.f32.xlu0 %v1278
        %v1301 = vpop.xlane.xlu0 %1300
        %1302 = vmax.xlane.f32.xlu0 %v1279
        %v1303 = vpop.xlane.xlu0 %1302
        %1304 = vmax.xlane.f32.xlu0 %v1280
        %v1305 = vpop.xlane.xlu0 %1304
        %1306 = vmax.xlane.f32.xlu0 %v1281
        %v1307 = vpop.xlane.xlu0 %1306
        %1308 = vmax.xlane.f32.xlu0 %v1282
        %v1309 = vpop.xlane.xlu0 %1308
        %1310 = vmax.xlane.f32.xlu0 %v1283
        %v1311 = vpop.xlane.xlu0 %1310
        %1312 = vmax.xlane.f32.xlu0 %v1284
        %v1313 = vpop.xlane.xlu0 %1312
        %1314 = vmax.xlane.f32.xlu0 %v1285
        %v1315 = vpop.xlane.xlu0 %1314
        %1316 = vmax.xlane.f32.xlu0 %v1286
        %v1317 = vpop.xlane.xlu0 %1316
        %1318 = vmax.xlane.f32.xlu0 %v1287
        %v1319 = vpop.xlane.xlu0 %1318
        %vm1320 = vcmp.ge.f32.partialorder %v1272, %v1289
        %vm1321 = vcmp.ge.f32.partialorder %v1273, %v1291
        %vm1322 = vcmp.ge.f32.partialorder %v1274, %v1293
        %vm1323 = vcmp.ge.f32.partialorder %v1275, %v1295
        %vm1324 = vcmp.ge.f32.partialorder %v1276, %v1297
        %vm1325 = vcmp.ge.f32.partialorder %v1277, %v1299
        %vm1326 = vcmp.ge.f32.partialorder %v1278, %v1301
        %vm1327 = vcmp.ge.f32.partialorder %v1279, %v1303
        %vm1328 = vcmp.ge.f32.partialorder %v1280, %v1305
        %vm1329 = vcmp.ge.f32.partialorder %v1281, %v1307
        %vm1330 = vcmp.ge.f32.partialorder %v1282, %v1309
        %vm1331 = vcmp.ge.f32.partialorder %v1283, %v1311
        %vm1332 = vcmp.ge.f32.partialorder %v1284, %v1313
        %vm1333 = vcmp.ge.f32.partialorder %v1285, %v1315
        %vm1334 = vcmp.ge.f32.partialorder %v1286, %v1317
        %vm1335 = vcmp.ge.f32.partialorder %v1287, %v1319
        %v1336 = vsel %vm1320, -inf, %v1272
        %v1337 = vsel %vm1321, -inf, %v1273
        %v1338 = vsel %vm1322, -inf, %v1274
        %v1339 = vsel %vm1323, -inf, %v1275
        %v1340 = vsel %vm1324, -inf, %v1276
        %v1341 = vsel %vm1325, -inf, %v1277
        %v1342 = vsel %vm1326, -inf, %v1278
        %v1343 = vsel %vm1327, -inf, %v1279
        %v1344 = vsel %vm1328, -inf, %v1280
        %v1345 = vsel %vm1329, -inf, %v1281
        %v1346 = vsel %vm1330, -inf, %v1282
        %v1347 = vsel %vm1331, -inf, %v1283
        %v1348 = vsel %vm1332, -inf, %v1284
        %v1349 = vsel %vm1333, -inf, %v1285
        %v1350 = vsel %vm1334, -inf, %v1286
        %v1351 = vsel %vm1335, -inf, %v1287
        %1352 = vmax.xlane.f32.xlu0 %v1336
        %v1353 = vpop.xlane.xlu0 %1352
        %1354 = vmax.xlane.f32.xlu0 %v1337
        %v1355 = vpop.xlane.xlu0 %1354
        %1356 = vmax.xlane.f32.xlu0 %v1338
        %v1357 = vpop.xlane.xlu0 %1356
        %1358 = vmax.xlane.f32.xlu0 %v1339
        %v1359 = vpop.xlane.xlu0 %1358
        %1360 = vmax.xlane.f32.xlu0 %v1340
        %v1361 = vpop.xlane.xlu0 %1360
        %1362 = vmax.xlane.f32.xlu0 %v1341
        %v1363 = vpop.xlane.xlu0 %1362
        %1364 = vmax.xlane.f32.xlu0 %v1342
        %v1365 = vpop.xlane.xlu0 %1364
        %1366 = vmax.xlane.f32.xlu0 %v1343
        %v1367 = vpop.xlane.xlu0 %1366
        %1368 = vmax.xlane.f32.xlu0 %v1344
        %v1369 = vpop.xlane.xlu0 %1368
        %1370 = vmax.xlane.f32.xlu0 %v1345
        %v1371 = vpop.xlane.xlu0 %1370
        %1372 = vmax.xlane.f32.xlu0 %v1346
        %v1373 = vpop.xlane.xlu0 %1372
        %1374 = vmax.xlane.f32.xlu0 %v1347
        %v1375 = vpop.xlane.xlu0 %1374
        %1376 = vmax.xlane.f32.xlu0 %v1348
        %v1377 = vpop.xlane.xlu0 %1376
        %1378 = vmax.xlane.f32.xlu0 %v1349
        %v1379 = vpop.xlane.xlu0 %1378
        %1380 = vmax.xlane.f32.xlu0 %v1350
        %v1381 = vpop.xlane.xlu0 %1380
        %1382 = vmax.xlane.f32.xlu0 %v1351
        %v1383 = vpop.xlane.xlu0 %1382
        %vm1384 = vcmp.ge.f32.partialorder %v1336, %v1353
        %vm1385 = vcmp.ge.f32.partialorder %v1337, %v1355
        %vm1386 = vcmp.ge.f32.partialorder %v1338, %v1357
        %vm1387 = vcmp.ge.f32.partialorder %v1339, %v1359
        %vm1388 = vcmp.ge.f32.partialorder %v1340, %v1361
        %vm1389 = vcmp.ge.f32.partialorder %v1341, %v1363
        %vm1390 = vcmp.ge.f32.partialorder %v1342, %v1365
        %vm1391 = vcmp.ge.f32.partialorder %v1343, %v1367
        %vm1392 = vcmp.ge.f32.partialorder %v1344, %v1369
        %vm1393 = vcmp.ge.f32.partialorder %v1345, %v1371
        %vm1394 = vcmp.ge.f32.partialorder %v1346, %v1373
        %vm1395 = vcmp.ge.f32.partialorder %v1347, %v1375
        %vm1396 = vcmp.ge.f32.partialorder %v1348, %v1377
        %vm1397 = vcmp.ge.f32.partialorder %v1349, %v1379
        %vm1398 = vcmp.ge.f32.partialorder %v1350, %v1381
        %vm1399 = vcmp.ge.f32.partialorder %v1351, %v1383
        %v1400 = vsel %vm1384, -inf, %v1336
        %v1401 = vsel %vm1385, -inf, %v1337
        %v1402 = vsel %vm1386, -inf, %v1338
        %v1403 = vsel %vm1387, -inf, %v1339
        %v1404 = vsel %vm1388, -inf, %v1340
        %v1405 = vsel %vm1389, -inf, %v1341
        %v1406 = vsel %vm1390, -inf, %v1342
        %v1407 = vsel %vm1391, -inf, %v1343
        %v1408 = vsel %vm1392, -inf, %v1344
        %v1409 = vsel %vm1393, -inf, %v1345
        %v1410 = vsel %vm1394, -inf, %v1346
        %v1411 = vsel %vm1395, -inf, %v1347
        %v1412 = vsel %vm1396, -inf, %v1348
        %v1413 = vsel %vm1397, -inf, %v1349
        %v1414 = vsel %vm1398, -inf, %v1350
        %v1415 = vsel %vm1399, -inf, %v1351
        %1416 = vmax.xlane.f32.xlu0 %v1400
        %v1417 = vpop.xlane.xlu0 %1416
        %1418 = vmax.xlane.f32.xlu0 %v1401
        %v1419 = vpop.xlane.xlu0 %1418
        %1420 = vmax.xlane.f32.xlu0 %v1402
        %v1421 = vpop.xlane.xlu0 %1420
        %1422 = vmax.xlane.f32.xlu0 %v1403
        %v1423 = vpop.xlane.xlu0 %1422
        %1424 = vmax.xlane.f32.xlu0 %v1404
        %v1425 = vpop.xlane.xlu0 %1424
        %1426 = vmax.xlane.f32.xlu0 %v1405
        %v1427 = vpop.xlane.xlu0 %1426
        %1428 = vmax.xlane.f32.xlu0 %v1406
        %v1429 = vpop.xlane.xlu0 %1428
        %1430 = vmax.xlane.f32.xlu0 %v1407
        %v1431 = vpop.xlane.xlu0 %1430
        %1432 = vmax.xlane.f32.xlu0 %v1408
        %v1433 = vpop.xlane.xlu0 %1432
        %1434 = vmax.xlane.f32.xlu0 %v1409
        %v1435 = vpop.xlane.xlu0 %1434
        %1436 = vmax.xlane.f32.xlu0 %v1410
        %v1437 = vpop.xlane.xlu0 %1436
        %1438 = vmax.xlane.f32.xlu0 %v1411
        %v1439 = vpop.xlane.xlu0 %1438
        %1440 = vmax.xlane.f32.xlu0 %v1412
        %v1441 = vpop.xlane.xlu0 %1440
        %1442 = vmax.xlane.f32.xlu0 %v1413
        %v1443 = vpop.xlane.xlu0 %1442
        %1444 = vmax.xlane.f32.xlu0 %v1414
        %v1445 = vpop.xlane.xlu0 %1444
        %1446 = vmax.xlane.f32.xlu0 %v1415
        %v1447 = vpop.xlane.xlu0 %1446
        %vm1448 = vcmp.ge.f32.partialorder %v1400, %v1417
        %vm1449 = vcmp.ge.f32.partialorder %v1401, %v1419
        %vm1450 = vcmp.ge.f32.partialorder %v1402, %v1421
        %vm1451 = vcmp.ge.f32.partialorder %v1403, %v1423
        %vm1452 = vcmp.ge.f32.partialorder %v1404, %v1425
        %vm1453 = vcmp.ge.f32.partialorder %v1405, %v1427
        %vm1454 = vcmp.ge.f32.partialorder %v1406, %v1429
        %vm1455 = vcmp.ge.f32.partialorder %v1407, %v1431
        %vm1456 = vcmp.ge.f32.partialorder %v1408, %v1433
        %vm1457 = vcmp.ge.f32.partialorder %v1409, %v1435
        %vm1458 = vcmp.ge.f32.partialorder %v1410, %v1437
        %vm1459 = vcmp.ge.f32.partialorder %v1411, %v1439
        %vm1460 = vcmp.ge.f32.partialorder %v1412, %v1441
        %vm1461 = vcmp.ge.f32.partialorder %v1413, %v1443
        %vm1462 = vcmp.ge.f32.partialorder %v1414, %v1445
        %vm1463 = vcmp.ge.f32.partialorder %v1415, %v1447
        %v1464 = vsel %vm1448, -inf, %v1400
        %v1465 = vsel %vm1449, -inf, %v1401
        %v1466 = vsel %vm1450, -inf, %v1402
        %v1467 = vsel %vm1451, -inf, %v1403
        %v1468 = vsel %vm1452, -inf, %v1404
        %v1469 = vsel %vm1453, -inf, %v1405
        %v1470 = vsel %vm1454, -inf, %v1406
        %v1471 = vsel %vm1455, -inf, %v1407
        %v1472 = vsel %vm1456, -inf, %v1408
        %v1473 = vsel %vm1457, -inf, %v1409
        %v1474 = vsel %vm1458, -inf, %v1410
        %v1475 = vsel %vm1459, -inf, %v1411
        %v1476 = vsel %vm1460, -inf, %v1412
        %v1477 = vsel %vm1461, -inf, %v1413
        %v1478 = vsel %vm1462, -inf, %v1414
        %v1479 = vsel %vm1463, -inf, %v1415
        %1480 = vmax.xlane.f32.xlu0 %v1464
        %v1481 = vpop.xlane.xlu0 %1480
        %1482 = vmax.xlane.f32.xlu0 %v1465
        %v1483 = vpop.xlane.xlu0 %1482
        %1484 = vmax.xlane.f32.xlu0 %v1466
        %v1485 = vpop.xlane.xlu0 %1484
        %1486 = vmax.xlane.f32.xlu0 %v1467
        %v1487 = vpop.xlane.xlu0 %1486
        %1488 = vmax.xlane.f32.xlu0 %v1468
        %v1489 = vpop.xlane.xlu0 %1488
        %1490 = vmax.xlane.f32.xlu0 %v1469
        %v1491 = vpop.xlane.xlu0 %1490
        %1492 = vmax.xlane.f32.xlu0 %v1470
        %v1493 = vpop.xlane.xlu0 %1492
        %1494 = vmax.xlane.f32.xlu0 %v1471
        %v1495 = vpop.xlane.xlu0 %1494
        %1496 = vmax.xlane.f32.xlu0 %v1472
        %v1497 = vpop.xlane.xlu0 %1496
        %1498 = vmax.xlane.f32.xlu0 %v1473
        %v1499 = vpop.xlane.xlu0 %1498
        %1500 = vmax.xlane.f32.xlu0 %v1474
        %v1501 = vpop.xlane.xlu0 %1500
        %1502 = vmax.xlane.f32.xlu0 %v1475
        %v1503 = vpop.xlane.xlu0 %1502
        %1504 = vmax.xlane.f32.xlu0 %v1476
        %v1505 = vpop.xlane.xlu0 %1504
        %1506 = vmax.xlane.f32.xlu0 %v1477
        %v1507 = vpop.xlane.xlu0 %1506
        %1508 = vmax.xlane.f32.xlu0 %v1478
        %v1509 = vpop.xlane.xlu0 %1508
        %1510 = vmax.xlane.f32.xlu0 %v1479
        %v1511 = vpop.xlane.xlu0 %1510
        %vm1512 = vcmp.ge.f32.partialorder %v1464, %v1481
        %vm1513 = vcmp.ge.f32.partialorder %v1465, %v1483
        %vm1514 = vcmp.ge.f32.partialorder %v1466, %v1485
        %vm1515 = vcmp.ge.f32.partialorder %v1467, %v1487
        %vm1516 = vcmp.ge.f32.partialorder %v1468, %v1489
        %vm1517 = vcmp.ge.f32.partialorder %v1469, %v1491
        %vm1518 = vcmp.ge.f32.partialorder %v1470, %v1493
        %vm1519 = vcmp.ge.f32.partialorder %v1471, %v1495
        %vm1520 = vcmp.ge.f32.partialorder %v1472, %v1497
        %vm1521 = vcmp.ge.f32.partialorder %v1473, %v1499
        %vm1522 = vcmp.ge.f32.partialorder %v1474, %v1501
        %vm1523 = vcmp.ge.f32.partialorder %v1475, %v1503
        %vm1524 = vcmp.ge.f32.partialorder %v1476, %v1505
        %vm1525 = vcmp.ge.f32.partialorder %v1477, %v1507
        %vm1526 = vcmp.ge.f32.partialorder %v1478, %v1509
        %vm1527 = vcmp.ge.f32.partialorder %v1479, %v1511
        %v1528 = vsel %vm1512, -inf, %v1464
        %v1529 = vsel %vm1513, -inf, %v1465
        %v1530 = vsel %vm1514, -inf, %v1466
        %v1531 = vsel %vm1515, -inf, %v1467
        %v1532 = vsel %vm1516, -inf, %v1468
        %v1533 = vsel %vm1517, -inf, %v1469
        %v1534 = vsel %vm1518, -inf, %v1470
        %v1535 = vsel %vm1519, -inf, %v1471
        %v1536 = vsel %vm1520, -inf, %v1472
        %v1537 = vsel %vm1521, -inf, %v1473
        %v1538 = vsel %vm1522, -inf, %v1474
        %v1539 = vsel %vm1523, -inf, %v1475
        %v1540 = vsel %vm1524, -inf, %v1476
        %v1541 = vsel %vm1525, -inf, %v1477
        %v1542 = vsel %vm1526, -inf, %v1478
        %v1543 = vsel %vm1527, -inf, %v1479
        %1544 = vmax.xlane.f32.xlu0 %v1528
        %v1545 = vpop.xlane.xlu0 %1544
        %1546 = vmax.xlane.f32.xlu0 %v1529
        %v1547 = vpop.xlane.xlu0 %1546
        %1548 = vmax.xlane.f32.xlu0 %v1530
        %v1549 = vpop.xlane.xlu0 %1548
        %1550 = vmax.xlane.f32.xlu0 %v1531
        %v1551 = vpop.xlane.xlu0 %1550
        %1552 = vmax.xlane.f32.xlu0 %v1532
        %v1553 = vpop.xlane.xlu0 %1552
        %1554 = vmax.xlane.f32.xlu0 %v1533
        %v1555 = vpop.xlane.xlu0 %1554
        %1556 = vmax.xlane.f32.xlu0 %v1534
        %v1557 = vpop.xlane.xlu0 %1556
        %1558 = vmax.xlane.f32.xlu0 %v1535
        %v1559 = vpop.xlane.xlu0 %1558
        %1560 = vmax.xlane.f32.xlu0 %v1536
        %v1561 = vpop.xlane.xlu0 %1560
        %1562 = vmax.xlane.f32.xlu0 %v1537
        %v1563 = vpop.xlane.xlu0 %1562
        %1564 = vmax.xlane.f32.xlu0 %v1538
        %v1565 = vpop.xlane.xlu0 %1564
        %1566 = vmax.xlane.f32.xlu0 %v1539
        %v1567 = vpop.xlane.xlu0 %1566
        %1568 = vmax.xlane.f32.xlu0 %v1540
        %v1569 = vpop.xlane.xlu0 %1568
        %1570 = vmax.xlane.f32.xlu0 %v1541
        %v1571 = vpop.xlane.xlu0 %1570
        %1572 = vmax.xlane.f32.xlu0 %v1542
        %v1573 = vpop.xlane.xlu0 %1572
        %1574 = vmax.xlane.f32.xlu0 %v1543
        %v1575 = vpop.xlane.xlu0 %1574
        %vm1576 = vcmp.ge.f32.partialorder %v499, %v1545
        %vm1577 = vcmp.ge.f32.partialorder %v500, %v1547
        %vm1578 = vcmp.ge.f32.partialorder %v501, %v1549
        %vm1579 = vcmp.ge.f32.partialorder %v502, %v1551
        %vm1580 = vcmp.ge.f32.partialorder %v503, %v1553
        %vm1581 = vcmp.ge.f32.partialorder %v504, %v1555
        %vm1582 = vcmp.ge.f32.partialorder %v505, %v1557
        %vm1583 = vcmp.ge.f32.partialorder %v506, %v1559
        %vm1584 = vcmp.ge.f32.partialorder %v507, %v1561
        %vm1585 = vcmp.ge.f32.partialorder %v508, %v1563
        %vm1586 = vcmp.ge.f32.partialorder %v509, %v1565
        %vm1587 = vcmp.ge.f32.partialorder %v510, %v1567
        %vm1588 = vcmp.ge.f32.partialorder %v511, %v1569
        %vm1589 = vcmp.ge.f32.partialorder %v512, %v1571
        %vm1590 = vcmp.ge.f32.partialorder %v513, %v1573
        %vm1591 = vcmp.ge.f32.partialorder %v514, %v1575
        %v1592 = vsel %vm1576, %v583, -inf
        %v1593 = vsel %vm1577, %v583, -inf
        %v1594 = vsel %vm1578, %v583, -inf
        %v1595 = vsel %vm1579, %v583, -inf
        %v1596 = vsel %vm1580, %v583, -inf
        %v1597 = vsel %vm1581, %v583, -inf
        %v1598 = vsel %vm1582, %v583, -inf
        %v1599 = vsel %vm1583, %v583, -inf
        %v1600 = vsel %vm1584, %v583, -inf
        %v1601 = vsel %vm1585, %v583, -inf
        %v1602 = vsel %vm1586, %v583, -inf
        %v1603 = vsel %vm1587, %v583, -inf
        %v1604 = vsel %vm1588, %v583, -inf
        %v1605 = vsel %vm1589, %v583, -inf
        %v1606 = vsel %vm1590, %v583, -inf
        %v1607 = vsel %vm1591, %v583, -inf
        %1608 = vmax.xlane.f32.xlu0 %v1592
        %v1609 = vpop.xlane.xlu0 %1608
        %1610 = vmax.xlane.f32.xlu0 %v1593
        %v1611 = vpop.xlane.xlu0 %1610
        %1612 = vmax.xlane.f32.xlu0 %v1594
        %v1613 = vpop.xlane.xlu0 %1612
        %1614 = vmax.xlane.f32.xlu0 %v1595
        %v1615 = vpop.xlane.xlu0 %1614
        %1616 = vmax.xlane.f32.xlu0 %v1596
        %v1617 = vpop.xlane.xlu0 %1616
        %1618 = vmax.xlane.f32.xlu0 %v1597
        %v1619 = vpop.xlane.xlu0 %1618
        %1620 = vmax.xlane.f32.xlu0 %v1598
        %v1621 = vpop.xlane.xlu0 %1620
        %1622 = vmax.xlane.f32.xlu0 %v1599
        %v1623 = vpop.xlane.xlu0 %1622
        %1624 = vmax.xlane.f32.xlu0 %v1600
        %v1625 = vpop.xlane.xlu0 %1624
        %1626 = vmax.xlane.f32.xlu0 %v1601
        %v1627 = vpop.xlane.xlu0 %1626
        %1628 = vmax.xlane.f32.xlu0 %v1602
        %v1629 = vpop.xlane.xlu0 %1628
        %1630 = vmax.xlane.f32.xlu0 %v1603
        %v1631 = vpop.xlane.xlu0 %1630
        %1632 = vmax.xlane.f32.xlu0 %v1604
        %v1633 = vpop.xlane.xlu0 %1632
        %1634 = vmax.xlane.f32.xlu0 %v1605
        %v1635 = vpop.xlane.xlu0 %1634
        %1636 = vmax.xlane.f32.xlu0 %v1606
        %v1637 = vpop.xlane.xlu0 %1636
        %1638 = vmax.xlane.f32.xlu0 %v1607
        %v1639 = vpop.xlane.xlu0 %1638
        %v1640 = vld [vmem:[%s3] sm:$0x1]
        %v1642 = vlaneseq
        %v1643 = vshrl.u32 %v1642, 7
        %v1644 = vsub.s32 0, %v1643
        %v1645 = vrot.slane %v1640, %v1644
        %v1647 = vmul.f32 %v244, %v1645
        %v1648 = vmul.f32 %v245, %v1645
        %v1649 = vmul.f32 %v246, %v1645
        %v1650 = vmul.f32 %v247, %v1645
        %v1651 = vmul.f32 %v248, %v1645
        %v1652 = vmul.f32 %v249, %v1645
        %v1653 = vmul.f32 %v250, %v1645
        %v1654 = vmul.f32 %v251, %v1645
        %v1655 = vmul.f32 %v252, %v1645
        %v1656 = vmul.f32 %v253, %v1645
        %v1657 = vmul.f32 %v254, %v1645
        %v1658 = vmul.f32 %v255, %v1645
        %v1659 = vmul.f32 %v256, %v1645
        %v1660 = vmul.f32 %v257, %v1645
        %v1661 = vmul.f32 %v258, %v1645
        %v1662 = vmul.f32 %v259, %v1645
        %v1663 = vsel %vm268, %v1647, 0.0
        %1664 = vadd.xlane.f32.xlu0 %v1663
        %v1665 = vpop.xlane.xlu0 %1664
        %v1666 = vsel %vm268, %v1648, 0.0
        %1667 = vadd.xlane.f32.xlu0 %v1666
        %v1668 = vpop.xlane.xlu0 %1667
        %v1669 = vsel %vm268, %v1649, 0.0
        %1670 = vadd.xlane.f32.xlu0 %v1669
        %v1671 = vpop.xlane.xlu0 %1670
        %v1672 = vsel %vm268, %v1650, 0.0
        %1673 = vadd.xlane.f32.xlu0 %v1672
        %v1674 = vpop.xlane.xlu0 %1673
        %v1675 = vsel %vm268, %v1651, 0.0
        %1676 = vadd.xlane.f32.xlu0 %v1675
        %v1677 = vpop.xlane.xlu0 %1676
        %v1678 = vsel %vm268, %v1652, 0.0
        %1679 = vadd.xlane.f32.xlu0 %v1678
        %v1680 = vpop.xlane.xlu0 %1679
        %v1681 = vsel %vm268, %v1653, 0.0
        %1682 = vadd.xlane.f32.xlu0 %v1681
        %v1683 = vpop.xlane.xlu0 %1682
        %v1684 = vsel %vm268, %v1654, 0.0
        %1685 = vadd.xlane.f32.xlu0 %v1684
        %v1686 = vpop.xlane.xlu0 %1685
        %v1687 = vsel %vm268, %v1655, 0.0
        %1688 = vadd.xlane.f32.xlu0 %v1687
        %v1689 = vpop.xlane.xlu0 %1688
        %v1690 = vsel %vm268, %v1656, 0.0
        %1691 = vadd.xlane.f32.xlu0 %v1690
        %v1692 = vpop.xlane.xlu0 %1691
        %v1693 = vsel %vm268, %v1657, 0.0
        %1694 = vadd.xlane.f32.xlu0 %v1693
        %v1695 = vpop.xlane.xlu0 %1694
        %v1696 = vsel %vm268, %v1658, 0.0
        %1697 = vadd.xlane.f32.xlu0 %v1696
        %v1698 = vpop.xlane.xlu0 %1697
        %v1699 = vsel %vm268, %v1659, 0.0
        %1700 = vadd.xlane.f32.xlu0 %v1699
        %v1701 = vpop.xlane.xlu0 %1700
        %v1702 = vsel %vm268, %v1660, 0.0
        %1703 = vadd.xlane.f32.xlu0 %v1702
        %v1704 = vpop.xlane.xlu0 %1703
        %v1705 = vsel %vm268, %v1661, 0.0
        %1706 = vadd.xlane.f32.xlu0 %v1705
        %v1707 = vpop.xlane.xlu0 %1706
        %v1708 = vsel %vm268, %v1662, 0.0
        %1709 = vadd.xlane.f32.xlu0 %v1708
        %v1710 = vpop.xlane.xlu0 %1709
        %s1711 = sld [smem:[#allocation2]]
        %v1712 = vstv %s1711
        %v1713 = vadd.f32 %v1665, %v1712
        %v1714 = vadd.f32 %v1668, %v1712
        %v1715 = vadd.f32 %v1671, %v1712
        %v1716 = vadd.f32 %v1674, %v1712
        %v1717 = vadd.f32 %v1677, %v1712
        %v1718 = vadd.f32 %v1680, %v1712
        %v1719 = vadd.f32 %v1683, %v1712
        %v1720 = vadd.f32 %v1686, %v1712
        %v1721 = vadd.f32 %v1689, %v1712
        %v1722 = vadd.f32 %v1692, %v1712
        %v1723 = vadd.f32 %v1695, %v1712
        %v1724 = vadd.f32 %v1698, %v1712
        %v1725 = vadd.f32 %v1701, %v1712
        %v1726 = vadd.f32 %v1704, %v1712
        %v1727 = vadd.f32 %v1707, %v1712
        %v1728 = vadd.f32 %v1710, %v1712
        %v1729 = vadd.f32 %v1609, %v1713
        %v1730 = vadd.f32 %v1611, %v1714
        %v1731 = vadd.f32 %v1613, %v1715
        %v1732 = vadd.f32 %v1615, %v1716
        %v1733 = vadd.f32 %v1617, %v1717
        %v1734 = vadd.f32 %v1619, %v1718
        %v1735 = vadd.f32 %v1621, %v1719
        %v1736 = vadd.f32 %v1623, %v1720
        %v1737 = vadd.f32 %v1625, %v1721
        %v1738 = vadd.f32 %v1627, %v1722
        %v1739 = vadd.f32 %v1629, %v1723
        %v1740 = vadd.f32 %v1631, %v1724
        %v1741 = vadd.f32 %v1633, %v1725
        %v1742 = vadd.f32 %v1635, %v1726
        %v1743 = vadd.f32 %v1637, %v1727
        %v1744 = vadd.f32 %v1639, %v1728
        %v1745 = vmax.f32 %v1729, 0.0
        %v1746 = vmax.f32 %v1730, 0.0
        %v1747 = vmax.f32 %v1731, 0.0
        %v1748 = vmax.f32 %v1732, 0.0
        %v1749 = vmax.f32 %v1733, 0.0
        %v1750 = vmax.f32 %v1734, 0.0
        %v1751 = vmax.f32 %v1735, 0.0
        %v1752 = vmax.f32 %v1736, 0.0
        %v1753 = vmax.f32 %v1737, 0.0
        %v1754 = vmax.f32 %v1738, 0.0
        %v1755 = vmax.f32 %v1739, 0.0
        %v1756 = vmax.f32 %v1740, 0.0
        %v1757 = vmax.f32 %v1741, 0.0
        %v1758 = vmax.f32 %v1742, 0.0
        %v1759 = vmax.f32 %v1743, 0.0
        %v1760 = vmax.f32 %v1744, 0.0
        %v1761 = vlaneseq
        %v1762 = vshrl.u32 %v1761, 7
        %v1763 = vadd.s32 %v1762, 8
        %v1764 = vadd.s32 %v1762, 16
        %v1765 = vadd.s32 %v1762, 24
        %v1766 = vadd.s32 %v1762, 32
        %v1767 = vadd.s32 %v1762, 40
        %v1768 = vadd.s32 %v1762, 48
        %v1769 = vadd.s32 %v1762, 56
        %v1770 = vadd.s32 %v1762, 64
        %v1771 = vadd.s32 %v1762, 72
        %v1772 = vadd.s32 %v1762, 80
        %v1773 = vadd.s32 %v1762, 88
        %v1774 = vadd.s32 %v1762, 96
        %v1775 = vadd.s32 %v1762, 104
        %v1776 = vadd.s32 %v1762, 112
        %v1777 = vadd.s32 %v1762, 120
        %v1778 = vlaneseq
        %v1779 = vand.u32 %v1778, 127
        %vm1780 = vcmp.eq.s32.totalorder %v1762, %v1779
        %vm1781 = vcmp.eq.s32.totalorder %v1763, %v1779
        %vm1782 = vcmp.eq.s32.totalorder %v1764, %v1779
        %vm1783 = vcmp.eq.s32.totalorder %v1765, %v1779
        %vm1784 = vcmp.eq.s32.totalorder %v1766, %v1779
        %vm1785 = vcmp.eq.s32.totalorder %v1767, %v1779
        %vm1786 = vcmp.eq.s32.totalorder %v1768, %v1779
        %vm1787 = vcmp.eq.s32.totalorder %v1769, %v1779
        %vm1788 = vcmp.eq.s32.totalorder %v1770, %v1779
        %vm1789 = vcmp.eq.s32.totalorder %v1771, %v1779
        %vm1790 = vcmp.eq.s32.totalorder %v1772, %v1779
        %vm1791 = vcmp.eq.s32.totalorder %v1773, %v1779
        %vm1792 = vcmp.eq.s32.totalorder %v1774, %v1779
        %vm1793 = vcmp.eq.s32.totalorder %v1775, %v1779
        %vm1794 = vcmp.eq.s32.totalorder %v1776, %v1779
        %vm1795 = vcmp.eq.s32.totalorder %v1777, %v1779
        %v1796 = vsel %vm1780, 1, 0
        %v1797 = vsel %vm1781, 1, 0
        %v1798 = vsel %vm1782, 1, 0
        %v1799 = vsel %vm1783, 1, 0
        %v1800 = vsel %vm1784, 1, 0
        %v1801 = vsel %vm1785, 1, 0
        %v1802 = vsel %vm1786, 1, 0
        %v1803 = vsel %vm1787, 1, 0
        %v1804 = vsel %vm1788, 1, 0
        %v1805 = vsel %vm1789, 1, 0
        %v1806 = vsel %vm1790, 1, 0
        %v1807 = vsel %vm1791, 1, 0
        %v1808 = vsel %vm1792, 1, 0
        %v1809 = vsel %vm1793, 1, 0
        %v1810 = vsel %vm1794, 1, 0
        %v1811 = vsel %vm1795, 1, 0
        %v1812 = vcvt.s32.f32 %v1796
        %v1813 = vcvt.s32.f32 %v1797
        %v1814 = vcvt.s32.f32 %v1798
        %v1815 = vcvt.s32.f32 %v1799
        %v1816 = vcvt.s32.f32 %v1800
        %v1817 = vcvt.s32.f32 %v1801
        %v1818 = vcvt.s32.f32 %v1802
        %v1819 = vcvt.s32.f32 %v1803
        %v1820 = vcvt.s32.f32 %v1804
        %v1821 = vcvt.s32.f32 %v1805
        %v1822 = vcvt.s32.f32 %v1806
        %v1823 = vcvt.s32.f32 %v1807
        %v1824 = vcvt.s32.f32 %v1808
        %v1825 = vcvt.s32.f32 %v1809
        %v1826 = vcvt.s32.f32 %v1810
        %v1827 = vcvt.s32.f32 %v1811
        %v1828 = vmul.f32 %v1745, %v1812
        %v1829 = vmul.f32 %v1746, %v1813
        %v1830 = vmul.f32 %v1747, %v1814
        %v1831 = vmul.f32 %v1748, %v1815
        %v1832 = vmul.f32 %v1749, %v1816
        %v1833 = vmul.f32 %v1750, %v1817
        %v1834 = vmul.f32 %v1751, %v1818
        %v1835 = vmul.f32 %v1752, %v1819
        %v1836 = vmul.f32 %v1753, %v1820
        %v1837 = vmul.f32 %v1754, %v1821
        %v1838 = vmul.f32 %v1755, %v1822
        %v1839 = vmul.f32 %v1756, %v1823
        %v1840 = vmul.f32 %v1757, %v1824
        %v1841 = vmul.f32 %v1758, %v1825
        %v1842 = vmul.f32 %v1759, %v1826
        %v1843 = vmul.f32 %v1760, %v1827
        %v1844 = vadd.f32 %v1828, %v1829
        %v1845 = vadd.f32 %v1844, %v1830
        %v1846 = vadd.f32 %v1845, %v1831
        %v1847 = vadd.f32 %v1846, %v1832
        %v1848 = vadd.f32 %v1847, %v1833
        %v1849 = vadd.f32 %v1848, %v1834
        %v1850 = vadd.f32 %v1849, %v1835
        %v1851 = vadd.f32 %v1850, %v1836
        %v1852 = vadd.f32 %v1851, %v1837
        %v1853 = vadd.f32 %v1852, %v1838
        %v1854 = vadd.f32 %v1853, %v1839
        %v1855 = vadd.f32 %v1854, %v1840
        %v1856 = vadd.f32 %v1855, %v1841
        %v1857 = vadd.f32 %v1856, %v1842
        %v1858 = vadd.f32 %v1857, %v1843
        %v1859 = vrot.slane %v1858, 4
        %v1860 = vadd.f32 %v1858, %v1859
        %v1861 = vrot.slane %v1860, 2
        %v1862 = vadd.f32 %v1860, %v1861
        %v1863 = vrot.slane %v1862, 1
        %v1864 = vadd.f32 %v1862, %v1863
        %vm1865 = vcmp.gt.f32.partialorder %v1745, %v1864
        %vm1866 = vcmp.gt.f32.partialorder %v1746, %v1864
        %vm1867 = vcmp.gt.f32.partialorder %v1747, %v1864
        %vm1868 = vcmp.gt.f32.partialorder %v1748, %v1864
        %vm1869 = vcmp.gt.f32.partialorder %v1749, %v1864
        %vm1870 = vcmp.gt.f32.partialorder %v1750, %v1864
        %vm1871 = vcmp.gt.f32.partialorder %v1751, %v1864
        %vm1872 = vcmp.gt.f32.partialorder %v1752, %v1864
        %vm1873 = vcmp.gt.f32.partialorder %v1753, %v1864
        %vm1874 = vcmp.gt.f32.partialorder %v1754, %v1864
        %vm1875 = vcmp.gt.f32.partialorder %v1755, %v1864
        %vm1876 = vcmp.gt.f32.partialorder %v1756, %v1864
        %vm1877 = vcmp.gt.f32.partialorder %v1757, %v1864
        %vm1878 = vcmp.gt.f32.partialorder %v1758, %v1864
        %vm1879 = vcmp.gt.f32.partialorder %v1759, %v1864
        %vm1880 = vcmp.gt.f32.partialorder %v1760, %v1864
        %vm1881 = vcmp.eq.f32.partialorder %v1745, %v1864
        %vm1882 = vcmp.eq.f32.partialorder %v1746, %v1864
        %vm1883 = vcmp.eq.f32.partialorder %v1747, %v1864
        %vm1884 = vcmp.eq.f32.partialorder %v1748, %v1864
        %vm1885 = vcmp.eq.f32.partialorder %v1749, %v1864
        %vm1886 = vcmp.eq.f32.partialorder %v1750, %v1864
        %vm1887 = vcmp.eq.f32.partialorder %v1751, %v1864
        %vm1888 = vcmp.eq.f32.partialorder %v1752, %v1864
        %vm1889 = vcmp.eq.f32.partialorder %v1753, %v1864
        %vm1890 = vcmp.eq.f32.partialorder %v1754, %v1864
        %vm1891 = vcmp.eq.f32.partialorder %v1755, %v1864
        %vm1892 = vcmp.eq.f32.partialorder %v1756, %v1864
        %vm1893 = vcmp.eq.f32.partialorder %v1757, %v1864
        %vm1894 = vcmp.eq.f32.partialorder %v1758, %v1864
        %vm1895 = vcmp.eq.f32.partialorder %v1759, %v1864
        %vm1896 = vcmp.eq.f32.partialorder %v1760, %v1864
        %vm1897 = vcmp.lt.s32.totalorder %v1762, %v1779
        %vm1898 = vcmp.lt.s32.totalorder %v1763, %v1779
        %vm1899 = vcmp.lt.s32.totalorder %v1764, %v1779
        %vm1900 = vcmp.lt.s32.totalorder %v1765, %v1779
        %vm1901 = vcmp.lt.s32.totalorder %v1766, %v1779
        %vm1902 = vcmp.lt.s32.totalorder %v1767, %v1779
        %vm1903 = vcmp.lt.s32.totalorder %v1768, %v1779
        %vm1904 = vcmp.lt.s32.totalorder %v1769, %v1779
        %vm1905 = vcmp.lt.s32.totalorder %v1770, %v1779
        %vm1906 = vcmp.lt.s32.totalorder %v1771, %v1779
        %vm1907 = vcmp.lt.s32.totalorder %v1772, %v1779
        %vm1908 = vcmp.lt.s32.totalorder %v1773, %v1779
        %vm1909 = vcmp.lt.s32.totalorder %v1774, %v1779
        %vm1910 = vcmp.lt.s32.totalorder %v1775, %v1779
        %vm1911 = vcmp.lt.s32.totalorder %v1776, %v1779
        %vm1912 = vcmp.lt.s32.totalorder %v1777, %v1779
        %vm1913 = vmand %vm1881, %vm1897
        %vm1914 = vmand %vm1882, %vm1898
        %vm1915 = vmand %vm1883, %vm1899
        %vm1916 = vmand %vm1884, %vm1900
        %vm1917 = vmand %vm1885, %vm1901
        %vm1918 = vmand %vm1886, %vm1902
        %vm1919 = vmand %vm1887, %vm1903
        %vm1920 = vmand %vm1888, %vm1904
        %vm1921 = vmand %vm1889, %vm1905
        %vm1922 = vmand %vm1890, %vm1906
        %vm1923 = vmand %vm1891, %vm1907
        %vm1924 = vmand %vm1892, %vm1908
        %vm1925 = vmand %vm1893, %vm1909
        %vm1926 = vmand %vm1894, %vm1910
        %vm1927 = vmand %vm1895, %vm1911
        %vm1928 = vmand %vm1896, %vm1912
        %vm1929 = vmor %vm1865, %vm1913
        %vm1930 = vmor %vm1866, %vm1914
        %vm1931 = vmor %vm1867, %vm1915
        %vm1932 = vmor %vm1868, %vm1916
        %vm1933 = vmor %vm1869, %vm1917
        %vm1934 = vmor %vm1870, %vm1918
        %vm1935 = vmor %vm1871, %vm1919
        %vm1936 = vmor %vm1872, %vm1920
        %vm1937 = vmor %vm1873, %vm1921
        %vm1938 = vmor %vm1874, %vm1922
        %vm1939 = vmor %vm1875, %vm1923
        %vm1940 = vmor %vm1876, %vm1924
        %vm1941 = vmor %vm1877, %vm1925
        %vm1942 = vmor %vm1878, %vm1926
        %vm1943 = vmor %vm1879, %vm1927
        %vm1944 = vmor %vm1880, %vm1928
        %v1945 = vsel %vm1929, 1, 0
        %v1946 = vsel %vm1930, 1, 0
        %v1947 = vsel %vm1931, 1, 0
        %v1948 = vsel %vm1932, 1, 0
        %v1949 = vsel %vm1933, 1, 0
        %v1950 = vsel %vm1934, 1, 0
        %v1951 = vsel %vm1935, 1, 0
        %v1952 = vsel %vm1936, 1, 0
        %v1953 = vsel %vm1937, 1, 0
        %v1954 = vsel %vm1938, 1, 0
        %v1955 = vsel %vm1939, 1, 0
        %v1956 = vsel %vm1940, 1, 0
        %v1957 = vsel %vm1941, 1, 0
        %v1958 = vsel %vm1942, 1, 0
        %v1959 = vsel %vm1943, 1, 0
        %v1960 = vsel %vm1944, 1, 0
        %v1961 = vcvt.s32.f32 %v1945
        %v1962 = vcvt.s32.f32 %v1946
        %v1963 = vcvt.s32.f32 %v1947
        %v1964 = vcvt.s32.f32 %v1948
        %v1965 = vcvt.s32.f32 %v1949
        %v1966 = vcvt.s32.f32 %v1950
        %v1967 = vcvt.s32.f32 %v1951
        %v1968 = vcvt.s32.f32 %v1952
        %v1969 = vcvt.s32.f32 %v1953
        %v1970 = vcvt.s32.f32 %v1954
        %v1971 = vcvt.s32.f32 %v1955
        %v1972 = vcvt.s32.f32 %v1956
        %v1973 = vcvt.s32.f32 %v1957
        %v1974 = vcvt.s32.f32 %v1958
        %v1975 = vcvt.s32.f32 %v1959
        %v1976 = vcvt.s32.f32 %v1960
        %v1977 = vadd.f32 %v1961, %v1962
        %v1978 = vadd.f32 %v1977, %v1963
        %v1979 = vadd.f32 %v1978, %v1964
        %v1980 = vadd.f32 %v1979, %v1965
        %v1981 = vadd.f32 %v1980, %v1966
        %v1982 = vadd.f32 %v1981, %v1967
        %v1983 = vadd.f32 %v1982, %v1968
        %v1984 = vadd.f32 %v1983, %v1969
        %v1985 = vadd.f32 %v1984, %v1970
        %v1986 = vadd.f32 %v1985, %v1971
        %v1987 = vadd.f32 %v1986, %v1972
        %v1988 = vadd.f32 %v1987, %v1973
        %v1989 = vadd.f32 %v1988, %v1974
        %v1990 = vadd.f32 %v1989, %v1975
        %v1991 = vadd.f32 %v1990, %v1976
        %v1992 = vrot.slane %v1991, 4
        %v1993 = vadd.f32 %v1991, %v1992
        %v1994 = vrot.slane %v1993, 2
        %v1995 = vadd.f32 %v1993, %v1994
        %v1996 = vrot.slane %v1995, 1
        %v1997 = vadd.f32 %v1995, %v1996
        %v1998 = vcvt.s32.f32 %v1762
        %v1999 = vcvt.s32.f32 %v1763
        %v2000 = vcvt.s32.f32 %v1764
        %v2001 = vcvt.s32.f32 %v1765
        %v2002 = vcvt.s32.f32 %v1766
        %v2003 = vcvt.s32.f32 %v1767
        %v2004 = vcvt.s32.f32 %v1768
        %v2005 = vcvt.s32.f32 %v1769
        %vm2006 = vcmp.eq.f32.partialorder %v1997, %v1998
        %vm2007 = vcmp.eq.f32.partialorder %v1997, %v1999
        %vm2008 = vcmp.eq.f32.partialorder %v1997, %v2000
        %vm2009 = vcmp.eq.f32.partialorder %v1997, %v2001
        %vm2010 = vcmp.eq.f32.partialorder %v1997, %v2002
        %vm2011 = vcmp.eq.f32.partialorder %v1997, %v2003
        %vm2012 = vcmp.eq.f32.partialorder %v1997, %v2004
        %vm2013 = vcmp.eq.f32.partialorder %v1997, %v2005
        %v2014 = vsel %vm2006, 1, 0
        %v2015 = vsel %vm2007, 1, 0
        %v2016 = vsel %vm2008, 1, 0
        %v2017 = vsel %vm2009, 1, 0
        %v2018 = vsel %vm2010, 1, 0
        %v2019 = vsel %vm2011, 1, 0
        %v2020 = vsel %vm2012, 1, 0
        %v2021 = vsel %vm2013, 1, 0
        %v2022 = vcvt.s32.f32 %v2014
        %v2023 = vcvt.s32.f32 %v2015
        %v2024 = vcvt.s32.f32 %v2016
        %v2025 = vcvt.s32.f32 %v2017
        %v2026 = vcvt.s32.f32 %v2018
        %v2027 = vcvt.s32.f32 %v2019
        %v2028 = vcvt.s32.f32 %v2020
        %v2029 = vcvt.s32.f32 %v2021
        %2030 = vmatprep.subr.mxu0 0.0
        %2031 = vmatpush1.msra.mxu0 %v244
        %2032 = vmatprep.subr.mxu0 0.0
        %2033 = vmatpush1.msra.mxu0 %v245
        %2034 = vmatprep.subr.mxu0 0.0
        %2035 = vmatpush1.msra.mxu0 %v246
        %2036 = vmatprep.subr.mxu0 0.0
        %2037 = vmatpush1.msra.mxu0 %v247
        %2038 = vmatprep.subr.mxu0 0.0
        %2039 = vmatpush1.msra.mxu0 %v248
        %2040 = vmatprep.subr.mxu0 0.0
        %2041 = vmatpush1.msra.mxu0 %v249
        %2042 = vmatprep.subr.mxu0 0.0
        %2043 = vmatpush1.msra.mxu0 %v250
        %2044 = vmatprep.subr.mxu0 0.0
        %2045 = vmatpush1.msra.mxu0 %v251
        %2046 = vmatprep.subr.mxu0 0.0
        %2047 = vmatpush1.msra.mxu0 %v252
        %2048 = vmatprep.subr.mxu0 0.0
        %2049 = vmatpush1.msra.mxu0 %v253
        %2050 = vmatprep.subr.mxu0 0.0
        %2051 = vmatpush1.msra.mxu0 %v254
        %2052 = vmatprep.subr.mxu0 0.0
        %2053 = vmatpush1.msra.mxu0 %v255
        %2054 = vmatprep.subr.mxu0 0.0
        %2055 = vmatpush1.msra.mxu0 %v256
        %2056 = vmatprep.subr.mxu0 0.0
        %2057 = vmatpush1.msra.mxu0 %v257
        %2058 = vmatprep.subr.mxu0 0.0
        %2059 = vmatpush1.msra.mxu0 %v258
        %2060 = vmatprep.subr.mxu0 0.0
        %2061 = vmatpush1.msra.mxu0 %v259
        %2062 = vmatprep.subr.mxu0 0.0
        %2063 = vmatpush1.msra.mxu0 0.0
        %2064 = vmatprep.subr.mxu0 0.0
        %2065 = vmatpush1.msra.mxu0 0.0
        %2066 = vmatprep.subr.mxu0 0.0
        %2067 = vmatpush1.msra.mxu0 0.0
        %2068 = vmatprep.subr.mxu0 0.0
        %2069 = vmatpush1.msra.mxu0 0.0
        %2070 = vmatprep.subr.mxu0 0.0
        %2071 = vmatpush1.msra.mxu0 0.0
        %2072 = vmatprep.subr.mxu0 0.0
        %2073 = vmatpush1.msra.mxu0 0.0
        %2074 = vmatprep.subr.mxu0 0.0
        %2075 = vmatpush1.msra.mxu0 0.0
        %2076 = vmatprep.subr.mxu0 0.0
        %2077 = vmatpush1.msra.mxu0 0.0
        %2078 = vmatprep.subr.mxu0 0.0
        %2079 = vmatpush1.msra.mxu0 0.0
        %2080 = vmatprep.subr.mxu0 0.0
        %2081 = vmatpush1.msra.mxu0 0.0
        %2082 = vmatprep.subr.mxu0 0.0
        %2083 = vmatpush1.msra.mxu0 0.0
        %2084 = vmatprep.subr.mxu0 0.0
        %2085 = vmatpush1.msra.mxu0 0.0
        %2086 = vmatprep.subr.mxu0 0.0
        %2087 = vmatpush1.msra.mxu0 0.0
        %2088 = vmatprep.subr.mxu0 0.0
        %2089 = vmatpush1.msra.mxu0 0.0
        %2090 = vmatprep.subr.mxu0 0.0
        %2091 = vmatpush1.msra.mxu0 0.0
        %2092 = vmatprep.subr.mxu0 0.0
        %2093 = vmatpush1.msra.mxu0 0.0
        %2094 = vmatprep.mubr.f32.mxu0 0.0
        %2095 = vmatmul.mubr.f32.gmra.mrb[0].mxu0 %v2022
        %v2096 = vpop.f32.mrb[0].mxu0
        %v2097 = vadd.f32 0.0, %v2096
        %v2098 = vpop.f32.mrb[0].mxu0
        %2099 = vmatprep.mubr.f32.mxu0 0.0
        %2100 = vmatmul.mubr.f32.gmra.mrb[0].mxu0 %v2023
        %v2101 = vpop.f32.mrb[0].mxu0
        %v2102 = vadd.f32 0.0, %v2101
        %v2103 = vpop.f32.mrb[0].mxu0
        %2104 = vmatprep.mubr.f32.mxu0 0.0
        %2105 = vmatmul.mubr.f32.gmra.mrb[0].mxu0 %v2024
        %v2106 = vpop.f32.mrb[0].mxu0
        %v2107 = vadd.f32 0.0, %v2106
        %v2108 = vpop.f32.mrb[0].mxu0
        %2109 = vmatprep.mubr.f32.mxu0 0.0
        %2110 = vmatmul.mubr.f32.gmra.mrb[0].mxu0 %v2025
        %v2111 = vpop.f32.mrb[0].mxu0
        %v2112 = vadd.f32 0.0, %v2111
        %v2113 = vpop.f32.mrb[0].mxu0
        %2114 = vmatprep.mubr.f32.mxu0 0.0
        %2115 = vmatmul.mubr.f32.gmra.mrb[0].mxu0 %v2026
        %v2116 = vpop.f32.mrb[0].mxu0
        %v2117 = vadd.f32 0.0, %v2116
        %v2118 = vpop.f32.mrb[0].mxu0
        %2119 = vmatprep.mubr.f32.mxu0 0.0
        %2120 = vmatmul.mubr.f32.gmra.mrb[0].mxu0 %v2027
        %v2121 = vpop.f32.mrb[0].mxu0
        %v2122 = vadd.f32 0.0, %v2121
        %v2123 = vpop.f32.mrb[0].mxu0
        %2124 = vmatprep.mubr.f32.mxu0 0.0
        %2125 = vmatmul.mubr.f32.gmra.mrb[0].mxu0 %v2028
        %v2126 = vpop.f32.mrb[0].mxu0
        %v2127 = vadd.f32 0.0, %v2126
        %v2128 = vpop.f32.mrb[0].mxu0
        %2129 = vmatprep.mubr.f32.mxu0 0.0
        %2130 = vmatmul.mubr.f32.gmra.mrb[0].mxu0 %v2029
        %v2131 = vpop.f32.mrb[0].mxu0
        %v2132 = vadd.f32 0.0, %v2131
        %v2133 = vpop.f32.mrb[0].mxu0
        %2134 = vdwg.mxu0
        %v2135 = vmul.f32 %v2022, %v1864
        %v2136 = vmul.f32 %v2023, %v1864
        %v2137 = vmul.f32 %v2024, %v1864
        %v2138 = vmul.f32 %v2025, %v1864
        %v2139 = vmul.f32 %v2026, %v1864
        %v2140 = vmul.f32 %v2027, %v1864
        %v2141 = vmul.f32 %v2028, %v1864
        %v2142 = vmul.f32 %v2029, %v1864
        %2143 = vadd.xlane.f32.xlu0 %v2135
        %v2144 = vpop.xlane.xlu0 %2143
        %2145 = vadd.xlane.f32.xlu0 %v2136
        %v2146 = vpop.xlane.xlu0 %2145
        %2147 = vadd.xlane.f32.xlu0 %v2137
        %v2148 = vpop.xlane.xlu0 %2147
        %2149 = vadd.xlane.f32.xlu0 %v2138
        %v2150 = vpop.xlane.xlu0 %2149
        %2151 = vadd.xlane.f32.xlu0 %v2139
        %v2152 = vpop.xlane.xlu0 %2151
        %2153 = vadd.xlane.f32.xlu0 %v2140
        %v2154 = vpop.xlane.xlu0 %2153
        %2155 = vadd.xlane.f32.xlu0 %v2141
        %v2156 = vpop.xlane.xlu0 %2155
        %2157 = vadd.xlane.f32.xlu0 %v2142
        %v2158 = vpop.xlane.xlu0 %2157
        %v2159 = vtanh.pop %v2144
        %v2160 = vtanh.pop %v2146
        %v2161 = vtanh.pop %v2148
        %v2162 = vtanh.pop %v2150
        %v2163 = vtanh.pop %v2152
        %v2164 = vtanh.pop %v2154
        %v2165 = vtanh.pop %v2156
        %v2166 = vtanh.pop %v2158
        %v2167 = vmul.f32 %v2097, %v2159
        %v2168 = vmul.f32 %v2102, %v2160
        %v2169 = vmul.f32 %v2107, %v2161
        %v2170 = vmul.f32 %v2112, %v2162
        %v2171 = vmul.f32 %v2117, %v2163
        %v2172 = vmul.f32 %v2122, %v2164
        %v2173 = vmul.f32 %v2127, %v2165
        %v2174 = vmul.f32 %v2132, %v2166
        %2175 = vst.msk [vmem:[%s233] sm:$0xff] %vm268, %v2167
        %2176 = vst.msk [vmem:[%s233 + $0x8] sm:$0xff] %vm268, %v2168
        %2177 = vst.msk [vmem:[%s233 + $0x10] sm:$0xff] %vm268, %v2169
        %2178 = vst.msk [vmem:[%s233 + $0x18] sm:$0xff] %vm268, %v2170
        %2179 = vst.msk [vmem:[%s233 + $0x20] sm:$0xff] %vm268, %v2171
        %2180 = vst.msk [vmem:[%s233 + $0x28] sm:$0xff] %vm268, %v2172
        %2181 = vst.msk [vmem:[%s233 + $0x30] sm:$0xff] %vm268, %v2173
        %2182 = vst.msk [vmem:[%s233 + $0x38] sm:$0xff] %vm268, %v2174
        %s2183 = sand.u32 %s143, 1
        %s2184 = scalar_lea.sflag [#allocation4], %s2183
        %s2185 = sand.u32 %s143, 1
        %s2186 = smul.addr %s2185, 64
        %s2187 = scalar_lea.vmem [#allocation3], %s2186
        // Predicated region
        $region41: #{edge_pooling_forward.1} parent=39 // pred_check
          %p2188 = pneg %p153
        $region42: #{edge_pooling_forward.1} parent=39 // pred_check_branch
          %2190 = sbr.rel (%p2188) target = $region44
        $region43: #{edge_pooling_forward.1} parent=39 // pred_region
          %s2192 = ssub.s32 1024, 1024
          %2193 = vsyncadd %s2184, %s2192
          %s2194 = smul.addr %s20, 8
          %s2195 = smul.addr %s2194, 128
          %s2196 = scalar_lea.hbm %s5, %s2195
          %s2197 = sshll.u32 %s2187, 4
          %s2198 = int_to_ptr.vmem [resolvable:$true] %s2197
          %2203 = dma.vmem_to_hbm [thread:$0]  %s2198, 1024, %s2196, %s2184, 128, 128, 8
        $region44: #{edge_pooling_forward.1} parent=39 // pred_fallthru
          _
      $region40: #{edge_pooling_forward.1} parent=5 // pred_fallthru
        _
      %p2204 = scmp.le.s32.totalorder 2, %s15
      // Predicated region
      $region45: #{edge_pooling_forward.1} parent=5 // pred_check
        %p2205 = pneg %p2204
      $region46: #{edge_pooling_forward.1} parent=5 // pred_check_branch
        %2207 = sbr.rel (%p2205) target = $region48
      $region47: #{edge_pooling_forward.1} parent=5 // pred_region
        %s2208 = ssub.s32 %s15, 2
        // Predicated region
        $region49: #{edge_pooling_forward.1} parent=47 // pred_check
          %p2209 = pneg %p159
        $region50: #{edge_pooling_forward.1} parent=47 // pred_check_branch
          %2211 = sbr.rel (%p2209) target = $region52
        $region51: #{edge_pooling_forward.1} parent=47 // pred_region
          %s2212 = sand.u32 %s144, 1
          %s2213 = scalar_lea.sflag [#allocation4], %s2212
          %s2214 = sand.u32 %s144, 1
          %s2215 = smul.addr %s2214, 64
          %s2216 = scalar_lea.vmem [#allocation3], %s2215
          %2217 = dma.done %s2213, 1024
        $region52: #{edge_pooling_forward.1} parent=47 // pred_fallthru
          _
      $region48: #{edge_pooling_forward.1} parent=5 // pred_fallthru
        _
    $region6: #{edge_pooling_forward.1} parent=1 // loop_footer
      %s19 = sadd.s32 1, %s15
    $region7: #{edge_pooling_forward.1} parent=1 // loop_footer_branch
      %14 = sbr.rel target = $region3
    $region8: #{edge_pooling_forward.1} parent=1 // loop_exit
      _
    %2218 = vsyncpa [#allocation4], 1
    %s2219 = scalar_lea.sflag [#allocation4], 1
    %2220 = vsyncpa %s2219, 1

</llo_original>
